<compile_context>
chip_gen: v6e
topology: v6e:2x2x1
jax: 0.10.0
libtpu: 0.0.40
codegen_flags: <defaults>
</compile_context>

<pallas_src>
import functools

import jax
import jax.numpy as jnp
from jax.experimental import pallas as pl
from jax.experimental.pallas import tpu as pltpu

EPS = 1e-5
LANE = 128
TILE_M1_TARGET = 512                   # pass-1 rows per grid step
TILE_M2_TARGET = 2048                  # pass-2 rows per grid step
PASS2_VMEM_BUDGET = 16 * 1024 * 1024   # rough cap for pass-2 tile sizing


def _round_up(x, m):
    return (x + m - 1) // m * m


def _vmem_limit_bytes():
    # Size the scoped-VMEM request per generation (v5e/v6e: 128 MiB physical,
    # v7x: 64 MiB); fall back to a universally-safe 32 MiB.
    try:
        cap = getattr(pltpu.get_tpu_info(), "vmem_capacity_bytes", None)
        if cap:
            return int(min(cap * 3 // 4, 96 * 1024 * 1024))
    except Exception:
        pass
    return 32 * 1024 * 1024


VMEM_LIMIT = _vmem_limit_bytes()


def _spec(shape, index_map, bufs=None):
    """BlockSpec, optionally requesting a deeper pipeline (Buffered(n))."""
    if bufs is not None:
        try:
            return pl.BlockSpec(shape, index_map, pipeline_mode=pl.Buffered(bufs))
        except Exception:  # older jax without pipeline_mode support
            pass
    return pl.BlockSpec(shape, index_map)


def _plan(M):
    """Row tiling.  Pure function of M so the padded row count of a conv output
    and of the residual later added to it always agree."""
    m8 = _round_up(max(M, 8), 8)
    tile1 = min(TILE_M1_TARGET, m8)
    n_split = 2 if m8 >= 2 * tile1 else 1     # megacore-shardable halves (v7x)
    m_pad = _round_up(M, n_split * tile1)
    return m_pad, tile1, n_split


# ---------------------------------------------------------------------------
# Pass 1: conv-as-matmul (bf16 operands, f32 MXU accumulation) + per-channel
#         sum / sum-of-squares accumulated in resident f32 blocks.
# ---------------------------------------------------------------------------
def _matmul_stats_kernel(p_ref, w_ref, y_ref, s_ref, ss_ref):
    @pl.when(pl.program_id(1) == 0)
    def _():
        s_ref[...] = jnp.zeros_like(s_ref)
        ss_ref[...] = jnp.zeros_like(ss_ref)

    y = jnp.dot(p_ref[...], w_ref[...], preferred_element_type=jnp.float32)
    y_ref[...] = y.astype(y_ref.dtype)          # bf16 store (halves y traffic)
    # Stats from the exact f32 MXU result: bf16 rounding only affects the
    # stored activation, never mu/var.
    # NOTE(perf): a (512,128) f32 `y` is a full register file; if the bundle
    # dump shows vreg spills here, reduce in 8-row sub-chunks via fori_loop.
    s_ref[...] += jnp.sum(y, axis=0, keepdims=True)[None]
    ss_ref[...] += jnp.sum(y * y, axis=0, keepdims=True)[None]


# ---------------------------------------------------------------------------
# Pass 2: in-kernel scale/bias from the batch statistics, then one FMA
#         (+ residual) (+ ReLU) over a lane-dense tile.
# ---------------------------------------------------------------------------
def _norm_kernel(*refs, m_count, apply_relu, has_residual):
    if has_residual:
        y_ref, s_ref, ss_ref, g_ref, b_ref, r_ref, o_ref = refs
    else:
        y_ref, s_ref, ss_ref, g_ref, b_ref, o_ref = refs

    inv_m = 1.0 / m_count                                   # static Python float
    s = jnp.sum(s_ref[...], axis=0)                         # (1, C) over splits
    ss = jnp.sum(ss_ref[...], axis=0)
    mu = s * inv_m
    var = jnp.maximum(ss * inv_m - mu * mu, 0.0)            # biased variance
    scale = g_ref[...] * jax.lax.rsqrt(var + EPS)
    bias = b_ref[...] - mu * scale

    y = y_ref[...].astype(jnp.float32) * scale + bias
    if has_residual:
        y = y + r_ref[...].astype(jnp.float32)
    if apply_relu:
        y = jnp.maximum(y, 0.0)
    o_ref[...] = y.astype(o_ref.dtype)


# ---------------------------------------------------------------------------
# Fused conv (as matmul) + train-mode BatchNorm (+ residual) (+ ReLU)
# ---------------------------------------------------------------------------
def conv_bn(p, M, w_mat, gamma, beta, *, residual=None, apply_relu=True,
            out_dtype=jnp.float32, return_padded=False):
    """p: (M or m_pad, k_pad) bf16 patches; w_mat: (K, Cout) f32.
    residual, if given, must already be the padded (m_pad, c_pad) f32 buffer.
    Returns (M, Cout) in out_dtype, or the padded (m_pad, c_pad) buffer when
    return_padded=True (so it can feed a later conv_bn pass 2 directly)."""
    K, cout = w_mat.shape
    k_pad = p.shape[1]
    c_pad = _round_up(cout, LANE)
    m_pad, tile1, n_split = _plan(M)
    steps = m_pad // (n_split * tile1)

    if p.shape[0] != m_pad:                                  # bf16 row pad only
        p = jnp.pad(p, ((0, m_pad - p.shape[0]), (0, 0)))
    w = jnp.pad(w_mat, ((0, k_pad - K), (0, c_pad - cout))).astype(jnp.bfloat16)

    lhs_bufs = 3 if (k_pad <= 256 and n_split * steps >= 3) else None
    y, s, ss = pl.pallas_call(
        _matmul_stats_kernel,
        out_shape=(
            jax.ShapeDtypeStruct((m_pad, c_pad), jnp.bfloat16),
            jax.ShapeDtypeStruct((n_split, 1, c_pad), jnp.float32),
            jax.ShapeDtypeStruct((n_split, 1, c_pad), jnp.float32),
        ),
        grid_spec=pltpu.PrefetchScalarGridSpec(
            num_scalar_prefetch=0,
            grid=(n_split, steps),           # leading axis megacore-shardable
            in_specs=[
                _spec((tile1, k_pad), lambda c, i: (c * steps + i, 0),
                      bufs=lhs_bufs),
                pl.BlockSpec((k_pad, c_pad), lambda c, i: (0, 0)),   # resident W
            ],
            out_specs=(
                pl.BlockSpec((tile1, c_pad), lambda c, i: (c * steps + i, 0)),
                pl.BlockSpec((1, 1, c_pad), lambda c, i: (c, 0, 0)),
                pl.BlockSpec((1, 1, c_pad), lambda c, i: (c, 0, 0)),
            ),
        ),
        compiler_params=pltpu.CompilerParams(
            dimension_semantics=("parallel", "arbitrary"),
            vmem_limit_bytes=VMEM_LIMIT,
        ),
    )(p, w)

    # ---- pass 2: bigger tile than pass 1 (amortize per-step overhead) ------
    bytes_per_row = c_pad * 24               # y/out/residual incl. multi-buffer
    cap = max(tile1, (PASS2_VMEM_BUDGET // bytes_per_row) // tile1 * tile1)
    mult = max(1, min(TILE_M2_TARGET, cap) // tile1)
    while (m_pad // tile1) % mult:
        mult -= 1
    tile2 = mult * tile1
    grid2 = m_pad // tile2
    deep = 3 if (c_pad <= 256 and grid2 >= 3) else None

    gamma_p = jnp.pad(gamma, (0, c_pad - cout)).reshape(1, c_pad)
    beta_p = jnp.pad(beta, (0, c_pad - cout)).reshape(1, c_pad)

    inputs = [y, s, ss, gamma_p, beta_p]
    in_specs = [
        _spec((tile2, c_pad), lambda i: (i, 0), bufs=deep),
        pl.BlockSpec((n_split, 1, c_pad), lambda i: (0, 0, 0)),
        pl.BlockSpec((n_split, 1, c_pad), lambda i: (0, 0, 0)),
        pl.BlockSpec((1, c_pad), lambda i: (0, 0)),
        pl.BlockSpec((1, c_pad), lambda i: (0, 0)),
    ]
    if residual is not None:
        assert residual.shape == (m_pad, c_pad), (residual.shape, (m_pad, c_pad))
        inputs.append(residual)
        in_specs.append(_spec((tile2, c_pad), lambda i: (i, 0), bufs=deep))

    kern = functools.partial(_norm_kernel, m_count=M, apply_relu=apply_relu,
                             has_residual=residual is not None)
    out = pl.pallas_call(
        kern,
        out_shape=jax.ShapeDtypeStruct((m_pad, c_pad), out_dtype),
        grid_spec=pltpu.PrefetchScalarGridSpec(
            num_scalar_prefetch=0,
            grid=(grid2,),
            in_specs=in_specs,
            out_specs=pl.BlockSpec((tile2, c_pad), lambda i: (i, 0)),
        ),
        compiler_params=pltpu.CompilerParams(
            dimension_semantics=("parallel",),
            vmem_limit_bytes=VMEM_LIMIT,
        ),
    )(*inputs)

    if return_padded:
        return out
    return out[:M, :cout]


# ---------------------------------------------------------------------------
# Plain-JAX glue: bf16 im2col with the K->k_pad lane zero-pad folded in
# ---------------------------------------------------------------------------
def im2col(x_nhwc, k, stride, pad):
    n, h, w, c = x_nhwc.shape
    xp = jnp.pad(x_nhwc, ((0, 0), (pad, pad), (pad, pad), (0, 0)))
    ho = (h + 2 * pad - k) // stride + 1
    wo = (w + 2 * pad - k) // stride + 1
    cols = []
    for i in range(k):
        for j in range(k):
            cols.append(xp[:, i:i + stride * ho:stride, j:j + stride * wo:stride, :])
    kk = k * k * c
    k_pad = _round_up(kk, LANE)
    if k_pad != kk:
        cols.append(jnp.zeros((n, ho, wo, k_pad - kk), x_nhwc.dtype))
    patches = jnp.concatenate(cols, axis=-1)                 # (N, Ho, Wo, k_pad)
    return patches.reshape(n * ho * wo, k_pad), (n, ho, wo)


# ---------------------------------------------------------------------------
# ResidualBlock forward (matches PyTorch module semantics, train-mode BN)
# ---------------------------------------------------------------------------
def residual_block(x_nchw, params):
    x = jnp.transpose(x_nchw, (0, 2, 3, 1))                  # NCHW -> NHWC
    in_c = x.shape[-1]
    out_c = params["w1"].shape[-1]
    shortcut = in_c != out_c
    stride1 = 2 if shortcut else 1

    x_bf16 = x.astype(jnp.bfloat16)                          # MXU conv operands

    # conv1 patches define the block's output geometry
    p1, (n1, h1, w1) = im2col(x_bf16, 3, stride1, 1)
    M = n1 * h1 * w1
    m_pad, _, _ = _plan(M)
    c_pad = _round_up(out_c, LANE)

    if shortcut:
        # down_conv (1x1, stride 2) + down_bn -> padded f32 residual, consumed
        # directly by conv2's pass 2 (no slice/re-pad round trip).
        pd = x_bf16[:, ::2, ::2, :].reshape(M, in_c)
        in_c_pad = _round_up(in_c, LANE)
        if in_c_pad != in_c:
            pd = jnp.pad(pd, ((0, 0), (0, in_c_pad - in_c)))
        residual = conv_bn(pd, M, params["wd"].reshape(in_c, out_c),
                           params["gd"], params["bd"],
                           apply_relu=False, out_dtype=jnp.float32,
                           return_padded=True)
    else:
        residual = jnp.pad(x.reshape(M, in_c),
                           ((0, m_pad - M), (0, c_pad - in_c)))

    # conv1 + bn1 + relu1  (bf16 output: it only feeds conv2's im2col)
    y1 = conv_bn(p1, M, params["w1"].reshape(9 * in_c, out_c),
                 params["g1"], params["b1"],
                 apply_relu=True, out_dtype=jnp.bfloat16)
    y1_img = y1.reshape(n1, h1, w1, out_c)

    # conv2 + bn2, += residual, relu2  (final output stays f32)
    p2, _ = im2col(y1_img, 3, 1, 1)
    out = conv_bn(p2, M, params["w2"].reshape(9 * out_c, out_c),
                  params["g2"], params["b2"],
                  residual=residual, apply_relu=True, out_dtype=jnp.float32)
    return jnp.transpose(out.reshape(n1, h1, w1, out_c), (0, 3, 1, 2))


# ---------------------------------------------------------------------------
# Pure-JAX reference (lax conv at matching bf16-operand precision)
# ---------------------------------------------------------------------------
def _bf16_round(a):
    return a.astype(jnp.bfloat16).astype(jnp.float32)


def _ref_conv(x_nhwc, w_hwio, stride, pad):
    return jax.lax.conv_general_dilated(
        _bf16_round(x_nhwc), _bf16_round(w_hwio),
        (stride, stride), [(pad, pad), (pad, pad)],
        dimension_numbers=("NHWC", "HWIO", "NHWC"),
    )


def _ref_bn_train(y, gamma, beta):
    mu = y.mean(axis=(0, 1, 2), keepdims=True)
    var = ((y - mu) ** 2).mean(axis=(0, 1, 2), keepdims=True)
    return (y - mu) / jnp.sqrt(var + EPS) * gamma + beta


def residual_block_ref(x_nchw, params):
    x = jnp.transpose(x_nchw, (0, 2, 3, 1))
    in_c = x.shape[-1]
    out_c = params["w1"].shape[-1]
    shortcut = in_c != out_c
    stride1 = 2 if shortcut else 1

    if shortcut:
        residual = _ref_bn_train(
            _ref_conv(x, params["wd"], 2, 0), params["gd"], params["bd"]
        )
    else:
        residual = x

    y = jnp.maximum(
        _ref_bn_train(_ref_conv(x, params["w1"], stride1, 1), params["g1"], params["b1"]),
        0.0,
    )
    y = _ref_bn_train(_ref_conv(y, params["w2"], 1, 1), params["g2"], params["b2"])
    y = jnp.maximum(y + residual, 0.0)
    return jnp.transpose(y, (0, 3, 1, 2))


# ---------------------------------------------------------------------------
def _make_params(key, in_c, out_c):
    k2, k3, k4 = jax.random.split(key, 3)
    params = {
        "w1": 0.1 * jax.random.normal(k2, (3, 3, in_c, out_c), jnp.float32),
        "w2": 0.1 * jax.random.normal(k3, (3, 3, out_c, out_c), jnp.float32),
        "g1": jnp.ones((out_c,), jnp.float32), "b1": jnp.zeros((out_c,), jnp.float32),
        "g2": jnp.ones((out_c,), jnp.float32), "b2": jnp.zeros((out_c,), jnp.float32),
    }
    if in_c != out_c:
        params.update({
            "wd": 0.1 * jax.random.normal(k4, (1, 1, in_c, out_c), jnp.float32),
            "gd": jnp.ones((out_c,), jnp.float32),
            "bd": jnp.zeros((out_c,), jnp.float32),
        })
    return params


if __name__ == "__main__":
    key = jax.random.PRNGKey(0)
    kx1, kp1, kx2, kp2 = jax.random.split(key, 4)

    fwd = jax.jit(residual_block)
    ref_fwd = jax.jit(residual_block_ref)

    # bf16 intermediate activations between the fused stages introduce ~1e-2
    # absolute deviations vs the f32-normalized reference; genuine bugs are O(1).
    ATOL, RTOL = 3e-2, 2e-2

    # 1) shortcut path (in != out): stride-2 conv1 + 1x1/stride-2 downsample
    x1 = jax.random.normal(kx1, (2, 4, 16, 16), jnp.float32)
    params1 = _make_params(kp1, 4, 8)
    out1 = jax.block_until_ready(fwd(x1, params1))
    ref1 = jax.block_until_ready(ref_fwd(x1, params1))
    assert out1.shape == (2, 8, 8, 8), out1.shape
    err1 = float(jnp.abs(out1 - ref1).max())
    assert jnp.allclose(out1, ref1, atol=ATOL, rtol=RTOL), err1

    # 2) identity path (in == out), bigger spatial so M spans several tiles and
    #    exercises the 2-way megacore split + larger pass-2 tile.
    x2 = jax.random.normal(kx2, (2, 8, 30, 30), jnp.float32)
    params2 = _make_params(kp2, 8, 8)
    out2 = jax.block_until_ready(fwd(x2, params2))
    ref2 = jax.block_until_ready(ref_fwd(x2, params2))
    assert out2.shape == (2, 8, 30, 30), out2.shape
    err2 = float(jnp.abs(out2 - ref2).max())
    assert jnp.allclose(out2, ref2, atol=ATOL, rtol=RTOL), err2

    print("KERNEL_OK")
</pallas_src>

<mosaic_0001>
module attributes {stable_mosaic.version = 11 : i64} {
  func.func @_norm_kernel(%arg0: i32, %arg1: memref<128x128xbf16, #tpu.memory_space<vmem>>, %arg2: memref<1x1x128xf32, #tpu.memory_space<vmem>>, %arg3: memref<1x1x128xf32, #tpu.memory_space<vmem>>, %arg4: memref<1x128xf32, #tpu.memory_space<vmem>>, %arg5: memref<1x128xf32, #tpu.memory_space<vmem>>, %arg6: memref<128x128xbf16, #tpu.memory_space<vmem>>) attributes {dimension_semantics = [#tpu.dimension_semantics<parallel>], iteration_bounds = array<i64: 1>, scalar_prefetch = 0 : i64, scratch_operands = 0 : i64, tpu.core_type = #tpu.core_type<tc>, window_params = [{transform_indices = @transform_0, window_bounds = array<i64: 128, 128>}, {pipeline_mode = #tpu.pipeline_mode<synchronous>, transform_indices = @transform_1, window_bounds = array<i64: 1, 1, 128>}, {pipeline_mode = #tpu.pipeline_mode<synchronous>, transform_indices = @transform_2, window_bounds = array<i64: 1, 1, 128>}, {pipeline_mode = #tpu.pipeline_mode<synchronous>, transform_indices = @transform_3, window_bounds = array<i64: 1, 128>}, {pipeline_mode = #tpu.pipeline_mode<synchronous>, transform_indices = @transform_4, window_bounds = array<i64: 1, 128>}, {transform_indices = @transform_5, window_bounds = array<i64: 128, 128>}]} {
    %c0 = arith.constant 0 : index
    %c0_0 = arith.constant 0 : index
    %c0_1 = arith.constant 0 : index
    %0 = vector.load %arg2[%c0, %c0_0, %c0_1] : memref<1x1x128xf32, #tpu.memory_space<vmem>>, vector<1x1x128xf32>
    %cst = arith.constant dense<0.000000e+00> : vector<1x128xf32>
    %1 = vector.multi_reduction <add>, %0, %cst [0] : vector<1x1x128xf32> to vector<1x128xf32>
    %c0_2 = arith.constant 0 : index
    %c0_3 = arith.constant 0 : index
    %c0_4 = arith.constant 0 : index
    %2 = vector.load %arg3[%c0_2, %c0_3, %c0_4] : memref<1x1x128xf32, #tpu.memory_space<vmem>>, vector<1x1x128xf32>
    %cst_5 = arith.constant dense<0.000000e+00> : vector<1x128xf32>
    %3 = vector.multi_reduction <add>, %2, %cst_5 [0] : vector<1x1x128xf32> to vector<1x128xf32>
    %cst_6 = arith.constant 7.812500e-03 : f32
    %4 = vector.broadcast %cst_6 : f32 to vector<1x128xf32>
    %5 = arith.mulf %1, %4 : vector<1x128xf32>
    %cst_7 = arith.constant 7.812500e-03 : f32
    %6 = vector.broadcast %cst_7 : f32 to vector<1x128xf32>
    %7 = arith.mulf %3, %6 : vector<1x128xf32>
    %8 = arith.mulf %5, %5 : vector<1x128xf32>
    %9 = arith.subf %7, %8 : vector<1x128xf32>
    %cst_8 = arith.constant 0.000000e+00 : f32
    %10 = vector.broadcast %cst_8 : f32 to vector<1x128xf32>
    %11 = arith.maximumf %9, %10 : vector<1x128xf32>
    %c0_9 = arith.constant 0 : index
    %c0_10 = arith.constant 0 : index
    %12 = vector.load %arg4[%c0_9, %c0_10] : memref<1x128xf32, #tpu.memory_space<vmem>>, vector<1x128xf32>
    %cst_11 = arith.constant 9.99999974E-6 : f32
    %13 = vector.broadcast %cst_11 : f32 to vector<1x128xf32>
    %14 = arith.addf %11, %13 : vector<1x128xf32>
    %15 = math.rsqrt %14 : vector<1x128xf32>
    %16 = arith.mulf %12, %15 : vector<1x128xf32>
    %c0_12 = arith.constant 0 : index
    %c0_13 = arith.constant 0 : index
    %17 = vector.load %arg5[%c0_12, %c0_13] : memref<1x128xf32, #tpu.memory_space<vmem>>, vector<1x128xf32>
    %18 = arith.mulf %5, %16 : vector<1x128xf32>
    %19 = arith.subf %17, %18 : vector<1x128xf32>
    %c0_14 = arith.constant 0 : index
    %c0_15 = arith.constant 0 : index
    %20 = vector.load %arg1[%c0_14, %c0_15] : memref<128x128xbf16, #tpu.memory_space<vmem>>, vector<128x128xbf16>
    %21 = arith.extf %20 : vector<128x128xbf16> to vector<128x128xf32>
    %22 = vector.broadcast %16 : vector<1x128xf32> to vector<128x128xf32>
    %23 = arith.mulf %21, %22 : vector<128x128xf32>
    %24 = vector.broadcast %19 : vector<1x128xf32> to vector<128x128xf32>
    %25 = arith.addf %23, %24 : vector<128x128xf32>
    %cst_16 = arith.constant 0.000000e+00 : f32
    %26 = vector.broadcast %cst_16 : f32 to vector<128x128xf32>
    %27 = arith.maximumf %25, %26 : vector<128x128xf32>
    %28 = arith.truncf %27 : vector<128x128xf32> to vector<128x128xbf16>
    %c0_17 = arith.constant 0 : index
    %c0_18 = arith.constant 0 : index
    %29 = vector.load %arg6[%c0_17, %c0_18] : memref<128x128xbf16, #tpu.memory_space<vmem>>, vector<128x128xbf16>
    tpu.vector_store %arg6[%c0_17, %c0_18], %28 {strides = array<i32>} : memref<128x128xbf16, #tpu.memory_space<vmem>>, vector<128x128xbf16>,
    return
  }
  func.func @transform_0(%arg0: i32) -> (i32, i32) {
    %c0_i32 = arith.constant 0 : i32
    %c0_i32_0 = arith.constant 0 : i32
    return %arg0, %c0_i32 : i32, i32
  }
  func.func @transform_1(%arg0: i32) -> (i32, i32, i32) {
    %c0_i32 = arith.constant 0 : i32
    %c0_i32_0 = arith.constant 0 : i32
    %c0_i32_1 = arith.constant 0 : i32
    %c0_i32_2 = arith.constant 0 : i32
    return %c0_i32, %c0_i32_0, %c0_i32_1 : i32, i32, i32
  }
  func.func @transform_2(%arg0: i32) -> (i32, i32, i32) {
    %c0_i32 = arith.constant 0 : i32
    %c0_i32_0 = arith.constant 0 : i32
    %c0_i32_1 = arith.constant 0 : i32
    %c0_i32_2 = arith.constant 0 : i32
    return %c0_i32, %c0_i32_0, %c0_i32_1 : i32, i32, i32
  }
  func.func @transform_3(%arg0: i32) -> (i32, i32) {
    %c0_i32 = arith.constant 0 : i32
    %c0_i32_0 = arith.constant 0 : i32
    %c0_i32_1 = arith.constant 0 : i32
    return %c0_i32, %c0_i32_0 : i32, i32
  }
  func.func @transform_4(%arg0: i32) -> (i32, i32) {
    %c0_i32 = arith.constant 0 : i32
    %c0_i32_0 = arith.constant 0 : i32
    %c0_i32_1 = arith.constant 0 : i32
    return %c0_i32, %c0_i32_0 : i32, i32
  }
  func.func @transform_5(%arg0: i32) -> (i32, i32) {
    %c0_i32 = arith.constant 0 : i32
    %c0_i32_0 = arith.constant 0 : i32
    return %arg0, %c0_i32 : i32, i32
  }
}

module attributes {stable_mosaic.version = 11 : i64} {
  func.func @_matmul_stats_kernel(%arg0: i32, %arg1: i32, %arg2: memref<128x128xbf16, #tpu.memory_space<vmem>>, %arg3: memref<128x128xbf16, #tpu.memory_space<vmem>>, %arg4: memref<128x128xbf16, #tpu.memory_space<vmem>>, %arg5: memref<1x1x128xf32, #tpu.memory_space<vmem>>, %arg6: memref<1x1x128xf32, #tpu.memory_space<vmem>>) attributes {dimension_semantics = [#tpu.dimension_semantics<parallel>, #tpu.dimension_semantics<arbitrary>], iteration_bounds = array<i64: 1, 1>, scalar_prefetch = 0 : i64, scratch_operands = 0 : i64, tpu.core_type = #tpu.core_type<tc>, window_params = [{transform_indices = @transform_0, window_bounds = array<i64: 128, 128>}, {pipeline_mode = #tpu.pipeline_mode<synchronous>, transform_indices = @transform_1, window_bounds = array<i64: 128, 128>}, {transform_indices = @transform_2, window_bounds = array<i64: 128, 128>}, {transform_indices = @transform_3, window_bounds = array<i64: 1, 1, 128>}, {transform_indices = @transform_4, window_bounds = array<i64: 1, 1, 128>}]} {
    %c0_i32 = arith.constant 0 : i32
    %0 = arith.cmpi eq, %arg1, %c0_i32 : i32
    %1 = arith.extui %0 : i1 to i32
    %c0_i32_0 = arith.constant 0 : i32
    %2 = arith.cmpi ne, %1, %c0_i32_0 : i32
    scf.if %2 {
      %cst_20 = arith.constant 0.000000e+00 : f32
      %21 = vector.broadcast %cst_20 : f32 to vector<1x1x128xf32>
      %c0_21 = arith.constant 0 : index
      %c0_22 = arith.constant 0 : index
      %c0_23 = arith.constant 0 : index
      %22 = vector.load %arg5[%c0_21, %c0_22, %c0_23] : memref<1x1x128xf32, #tpu.memory_space<vmem>>, vector<1x1x128xf32>
      tpu.vector_store %arg5[%c0_21, %c0_22, %c0_23], %21 {strides = array<i32>} : memref<1x1x128xf32, #tpu.memory_space<vmem>>, vector<1x1x128xf32>,
      %cst_24 = arith.constant 0.000000e+00 : f32
      %23 = vector.broadcast %cst_24 : f32 to vector<1x1x128xf32>
      %c0_25 = arith.constant 0 : index
      %c0_26 = arith.constant 0 : index
      %c0_27 = arith.constant 0 : index
      %24 = vector.load %arg6[%c0_25, %c0_26, %c0_27] : memref<1x1x128xf32, #tpu.memory_space<vmem>>, vector<1x1x128xf32>
      tpu.vector_store %arg6[%c0_25, %c0_26, %c0_27], %23 {strides = array<i32>} : memref<1x1x128xf32, #tpu.memory_space<vmem>>, vector<1x1x128xf32>,
    } else {
    }
    %c0 = arith.constant 0 : index
    %c0_1 = arith.constant 0 : index
    %3 = vector.load %arg2[%c0, %c0_1] : memref<128x128xbf16, #tpu.memory_space<vmem>>, vector<128x128xbf16>
    %c0_2 = arith.constant 0 : index
    %c0_3 = arith.constant 0 : index
    %4 = vector.load %arg3[%c0_2, %c0_3] : memref<128x128xbf16, #tpu.memory_space<vmem>>, vector<128x128xbf16>
    %cst = arith.constant dense<0.000000e+00> : vector<128x128xf32>
    %5 = tpu.matmul %3, %4, %cst {dimension_numbers = #tpu.dot_dimension_numbers<[1], [0], [0], [1], [0, 0, 1, 1], [], []>} : vector<128x128xbf16>, vector<128x128xbf16>, vector<128x128xf32> -> vector<128x128xf32>
    %6 = arith.truncf %5 : vector<128x128xf32> to vector<128x128xbf16>
    %c0_4 = arith.constant 0 : index
    %c0_5 = arith.constant 0 : index
    %7 = vector.load %arg4[%c0_4, %c0_5] : memref<128x128xbf16, #tpu.memory_space<vmem>>, vector<128x128xbf16>
    tpu.vector_store %arg4[%c0_4, %c0_5], %6 {strides = array<i32>} : memref<128x128xbf16, #tpu.memory_space<vmem>>, vector<128x128xbf16>,
    %c0_6 = arith.constant 0 : index
    %c0_7 = arith.constant 0 : index
    %c0_8 = arith.constant 0 : index
    %8 = vector.load %arg5[%c0_6, %c0_7, %c0_8] : memref<1x1x128xf32, #tpu.memory_space<vmem>>, vector<1x1x128xf32>
    %cst_9 = arith.constant dense<0.000000e+00> : vector<128xf32>
    %9 = vector.multi_reduction <add>, %5, %cst_9 [0] : vector<128x128xf32> to vector<128xf32>
    %10 = vector.shape_cast %9 : vector<128xf32> to vector<1x128xf32>
    %11 = vector.shape_cast %10 : vector<1x128xf32> to vector<1x1x128xf32>
    %12 = arith.addf %8, %11 : vector<1x1x128xf32>
    %c0_10 = arith.constant 0 : index
    %c0_11 = arith.constant 0 : index
    %c0_12 = arith.constant 0 : index
    %13 = vector.load %arg5[%c0_10, %c0_11, %c0_12] : memref<1x1x128xf32, #tpu.memory_space<vmem>>, vector<1x1x128xf32>
    tpu.vector_store %arg5[%c0_10, %c0_11, %c0_12], %12 {strides = array<i32>} : memref<1x1x128xf32, #tpu.memory_space<vmem>>, vector<1x1x128xf32>,
    %c0_13 = arith.constant 0 : index
    %c0_14 = arith.constant 0 : index
    %c0_15 = arith.constant 0 : index
    %14 = vector.load %arg6[%c0_13, %c0_14, %c0_15] : memref<1x1x128xf32, #tpu.memory_space<vmem>>, vector<1x1x128xf32>
    %15 = arith.mulf %5, %5 : vector<128x128xf32>
    %cst_16 = arith.constant dense<0.000000e+00> : vector<128xf32>
    %16 = vector.multi_reduction <add>, %15, %cst_16 [0] : vector<128x128xf32> to vector<128xf32>
    %17 = vector.shape_cast %16 : vector<128xf32> to vector<1x128xf32>
    %18 = vector.shape_cast %17 : vector<1x128xf32> to vector<1x1x128xf32>
    %19 = arith.addf %14, %18 : vector<1x1x128xf32>
    %c0_17 = arith.constant 0 : index
    %c0_18 = arith.constant 0 : index
    %c0_19 = arith.constant 0 : index
    %20 = vector.load %arg6[%c0_17, %c0_18, %c0_19] : memref<1x1x128xf32, #tpu.memory_space<vmem>>, vector<1x1x128xf32>
    tpu.vector_store %arg6[%c0_17, %c0_18, %c0_19], %19 {strides = array<i32>} : memref<1x1x128xf32, #tpu.memory_space<vmem>>, vector<1x1x128xf32>,
    return
  }
  func.func @transform_0(%arg0: i32, %arg1: i32) -> (i32, i32) {
    %c1_i32 = arith.constant 1 : i32
    %0 = arith.muli %arg0, %c1_i32 : i32
    %1 = arith.addi %0, %arg1 : i32
    %c0_i32 = arith.constant 0 : i32
    %c0_i32_0 = arith.constant 0 : i32
    return %1, %c0_i32 : i32, i32
  }
  func.func @transform_1(%arg0: i32, %arg1: i32) -> (i32, i32) {
    %c0_i32 = arith.constant 0 : i32
    %c0_i32_0 = arith.constant 0 : i32
    %c0_i32_1 = arith.constant 0 : i32
    return %c0_i32, %c0_i32_0 : i32, i32
  }
  func.func @transform_2(%arg0: i32, %arg1: i32) -> (i32, i32) {
    %c1_i32 = arith.constant 1 : i32
    %0 = arith.muli %arg0, %c1_i32 : i32
    %1 = arith.addi %0, %arg1 : i32
    %c0_i32 = arith.constant 0 : i32
    %c0_i32_0 = arith.constant 0 : i32
    return %1, %c0_i32 : i32, i32
  }
  func.func @transform_3(%arg0: i32, %arg1: i32) -> (i32, i32, i32) {
    %c0_i32 = arith.constant 0 : i32
    %c0_i32_0 = arith.constant 0 : i32
    %c0_i32_1 = arith.constant 0 : i32
    return %arg0, %c0_i32, %c0_i32_0 : i32, i32, i32
  }
  func.func @transform_4(%arg0: i32, %arg1: i32) -> (i32, i32, i32) {
    %c0_i32 = arith.constant 0 : i32
    %c0_i32_0 = arith.constant 0 : i32
    %c0_i32_1 = arith.constant 0 : i32
    return %arg0, %c0_i32, %c0_i32_0 : i32, i32, i32
  }
}

module attributes {stable_mosaic.version = 11 : i64} {
  func.func @_norm_kernel(%arg0: i32, %arg1: memref<128x128xbf16, #tpu.memory_space<vmem>>, %arg2: memref<1x1x128xf32, #tpu.memory_space<vmem>>, %arg3: memref<1x1x128xf32, #tpu.memory_space<vmem>>, %arg4: memref<1x128xf32, #tpu.memory_space<vmem>>, %arg5: memref<1x128xf32, #tpu.memory_space<vmem>>, %arg6: memref<128x128xf32, #tpu.memory_space<vmem>>) attributes {dimension_semantics = [#tpu.dimension_semantics<parallel>], iteration_bounds = array<i64: 1>, scalar_prefetch = 0 : i64, scratch_operands = 0 : i64, tpu.core_type = #tpu.core_type<tc>, window_params = [{transform_indices = @transform_0, window_bounds = array<i64: 128, 128>}, {pipeline_mode = #tpu.pipeline_mode<synchronous>, transform_indices = @transform_1, window_bounds = array<i64: 1, 1, 128>}, {pipeline_mode = #tpu.pipeline_mode<synchronous>, transform_indices = @transform_2, window_bounds = array<i64: 1, 1, 128>}, {pipeline_mode = #tpu.pipeline_mode<synchronous>, transform_indices = @transform_3, window_bounds = array<i64: 1, 128>}, {pipeline_mode = #tpu.pipeline_mode<synchronous>, transform_indices = @transform_4, window_bounds = array<i64: 1, 128>}, {transform_indices = @transform_5, window_bounds = array<i64: 128, 128>}]} {
    %c0 = arith.constant 0 : index
    %c0_0 = arith.constant 0 : index
    %c0_1 = arith.constant 0 : index
    %0 = vector.load %arg2[%c0, %c0_0, %c0_1] : memref<1x1x128xf32, #tpu.memory_space<vmem>>, vector<1x1x128xf32>
    %cst = arith.constant dense<0.000000e+00> : vector<1x128xf32>
    %1 = vector.multi_reduction <add>, %0, %cst [0] : vector<1x1x128xf32> to vector<1x128xf32>
    %c0_2 = arith.constant 0 : index
    %c0_3 = arith.constant 0 : index
    %c0_4 = arith.constant 0 : index
    %2 = vector.load %arg3[%c0_2, %c0_3, %c0_4] : memref<1x1x128xf32, #tpu.memory_space<vmem>>, vector<1x1x128xf32>
    %cst_5 = arith.constant dense<0.000000e+00> : vector<1x128xf32>
    %3 = vector.multi_reduction <add>, %2, %cst_5 [0] : vector<1x1x128xf32> to vector<1x128xf32>
    %cst_6 = arith.constant 7.812500e-03 : f32
    %4 = vector.broadcast %cst_6 : f32 to vector<1x128xf32>
    %5 = arith.mulf %1, %4 : vector<1x128xf32>
    %cst_7 = arith.constant 7.812500e-03 : f32
    %6 = vector.broadcast %cst_7 : f32 to vector<1x128xf32>
    %7 = arith.mulf %3, %6 : vector<1x128xf32>
    %8 = arith.mulf %5, %5 : vector<1x128xf32>
    %9 = arith.subf %7, %8 : vector<1x128xf32>
    %cst_8 = arith.constant 0.000000e+00 : f32
    %10 = vector.broadcast %cst_8 : f32 to vector<1x128xf32>
    %11 = arith.maximumf %9, %10 : vector<1x128xf32>
    %c0_9 = arith.constant 0 : index
    %c0_10 = arith.constant 0 : index
    %12 = vector.load %arg4[%c0_9, %c0_10] : memref<1x128xf32, #tpu.memory_space<vmem>>, vector<1x128xf32>
    %cst_11 = arith.constant 9.99999974E-6 : f32
    %13 = vector.broadcast %cst_11 : f32 to vector<1x128xf32>
    %14 = arith.addf %11, %13 : vector<1x128xf32>
    %15 = math.rsqrt %14 : vector<1x128xf32>
    %16 = arith.mulf %12, %15 : vector<1x128xf32>
    %c0_12 = arith.constant 0 : index
    %c0_13 = arith.constant 0 : index
    %17 = vector.load %arg5[%c0_12, %c0_13] : memref<1x128xf32, #tpu.memory_space<vmem>>, vector<1x128xf32>
    %18 = arith.mulf %5, %16 : vector<1x128xf32>
    %19 = arith.subf %17, %18 : vector<1x128xf32>
    %c0_14 = arith.constant 0 : index
    %c0_15 = arith.constant 0 : index
    %20 = vector.load %arg1[%c0_14, %c0_15] : memref<128x128xbf16, #tpu.memory_space<vmem>>, vector<128x128xbf16>
    %21 = arith.extf %20 : vector<128x128xbf16> to vector<128x128xf32>
    %22 = vector.broadcast %16 : vector<1x128xf32> to vector<128x128xf32>
    %23 = arith.mulf %21, %22 : vector<128x128xf32>
    %24 = vector.broadcast %19 : vector<1x128xf32> to vector<128x128xf32>
    %25 = arith.addf %23, %24 : vector<128x128xf32>
    %c0_16 = arith.constant 0 : index
    %c0_17 = arith.constant 0 : index
    %26 = vector.load %arg6[%c0_16, %c0_17] : memref<128x128xf32, #tpu.memory_space<vmem>>, vector<128x128xf32>
    tpu.vector_store %arg6[%c0_16, %c0_17], %25 {strides = array<i32>} : memref<128x128xf32, #tpu.memory_space<vmem>>, vector<128x128xf32>,
    return
  }
  func.func @transform_0(%arg0: i32) -> (i32, i32) {
    %c0_i32 = arith.constant 0 : i32
    %c0_i32_0 = arith.constant 0 : i32
    return %arg0, %c0_i32 : i32, i32
  }
  func.func @transform_1(%arg0: i32) -> (i32, i32, i32) {
    %c0_i32 = arith.constant 0 : i32
    %c0_i32_0 = arith.constant 0 : i32
    %c0_i32_1 = arith.constant 0 : i32
    %c0_i32_2 = arith.constant 0 : i32
    return %c0_i32, %c0_i32_0, %c0_i32_1 : i32, i32, i32
  }
  func.func @transform_2(%arg0: i32) -> (i32, i32, i32) {
    %c0_i32 = arith.constant 0 : i32
    %c0_i32_0 = arith.constant 0 : i32
    %c0_i32_1 = arith.constant 0 : i32
    %c0_i32_2 = arith.constant 0 : i32
    return %c0_i32, %c0_i32_0, %c0_i32_1 : i32, i32, i32
  }
  func.func @transform_3(%arg0: i32) -> (i32, i32) {
    %c0_i32 = arith.constant 0 : i32
    %c0_i32_0 = arith.constant 0 : i32
    %c0_i32_1 = arith.constant 0 : i32
    return %c0_i32, %c0_i32_0 : i32, i32
  }
  func.func @transform_4(%arg0: i32) -> (i32, i32) {
    %c0_i32 = arith.constant 0 : i32
    %c0_i32_0 = arith.constant 0 : i32
    %c0_i32_1 = arith.constant 0 : i32
    return %c0_i32, %c0_i32_0 : i32, i32
  }
  func.func @transform_5(%arg0: i32) -> (i32, i32) {
    %c0_i32 = arith.constant 0 : i32
    %c0_i32_0 = arith.constant 0 : i32
    return %arg0, %c0_i32 : i32, i32
  }
}

module attributes {stable_mosaic.version = 11 : i64} {
  func.func @_norm_kernel(%arg0: i32, %arg1: memref<128x128xbf16, #tpu.memory_space<vmem>>, %arg2: memref<1x1x128xf32, #tpu.memory_space<vmem>>, %arg3: memref<1x1x128xf32, #tpu.memory_space<vmem>>, %arg4: memref<1x128xf32, #tpu.memory_space<vmem>>, %arg5: memref<1x128xf32, #tpu.memory_space<vmem>>, %arg6: memref<128x128xf32, #tpu.memory_space<vmem>>, %arg7: memref<128x128xf32, #tpu.memory_space<vmem>>) attributes {dimension_semantics = [#tpu.dimension_semantics<parallel>], iteration_bounds = array<i64: 1>, scalar_prefetch = 0 : i64, scratch_operands = 0 : i64, tpu.core_type = #tpu.core_type<tc>, window_params = [{transform_indices = @transform_0, window_bounds = array<i64: 128, 128>}, {pipeline_mode = #tpu.pipeline_mode<synchronous>, transform_indices = @transform_1, window_bounds = array<i64: 1, 1, 128>}, {pipeline_mode = #tpu.pipeline_mode<synchronous>, transform_indices = @transform_2, window_bounds = array<i64: 1, 1, 128>}, {pipeline_mode = #tpu.pipeline_mode<synchronous>, transform_indices = @transform_3, window_bounds = array<i64: 1, 128>}, {pipeline_mode = #tpu.pipeline_mode<synchronous>, transform_indices = @transform_4, window_bounds = array<i64: 1, 128>}, {transform_indices = @transform_5, window_bounds = array<i64: 128, 128>}, {transform_indices = @transform_6, window_bounds = array<i64: 128, 128>}]} {
    %c0 = arith.constant 0 : index
    %c0_0 = arith.constant 0 : index
    %c0_1 = arith.constant 0 : index
    %0 = vector.load %arg2[%c0, %c0_0, %c0_1] : memref<1x1x128xf32, #tpu.memory_space<vmem>>, vector<1x1x128xf32>
    %cst = arith.constant dense<0.000000e+00> : vector<1x128xf32>
    %1 = vector.multi_reduction <add>, %0, %cst [0] : vector<1x1x128xf32> to vector<1x128xf32>
    %c0_2 = arith.constant 0 : index
    %c0_3 = arith.constant 0 : index
    %c0_4 = arith.constant 0 : index
    %2 = vector.load %arg3[%c0_2, %c0_3, %c0_4] : memref<1x1x128xf32, #tpu.memory_space<vmem>>, vector<1x1x128xf32>
    %cst_5 = arith.constant dense<0.000000e+00> : vector<1x128xf32>
    %3 = vector.multi_reduction <add>, %2, %cst_5 [0] : vector<1x1x128xf32> to vector<1x128xf32>
    %cst_6 = arith.constant 7.812500e-03 : f32
    %4 = vector.broadcast %cst_6 : f32 to vector<1x128xf32>
    %5 = arith.mulf %1, %4 : vector<1x128xf32>
    %cst_7 = arith.constant 7.812500e-03 : f32
    %6 = vector.broadcast %cst_7 : f32 to vector<1x128xf32>
    %7 = arith.mulf %3, %6 : vector<1x128xf32>
    %8 = arith.mulf %5, %5 : vector<1x128xf32>
    %9 = arith.subf %7, %8 : vector<1x128xf32>
    %cst_8 = arith.constant 0.000000e+00 : f32
    %10 = vector.broadcast %cst_8 : f32 to vector<1x128xf32>
    %11 = arith.maximumf %9, %10 : vector<1x128xf32>
    %c0_9 = arith.constant 0 : index
    %c0_10 = arith.constant 0 : index
    %12 = vector.load %arg4[%c0_9, %c0_10] : memref<1x128xf32, #tpu.memory_space<vmem>>, vector<1x128xf32>
    %cst_11 = arith.constant 9.99999974E-6 : f32
    %13 = vector.broadcast %cst_11 : f32 to vector<1x128xf32>
    %14 = arith.addf %11, %13 : vector<1x128xf32>
    %15 = math.rsqrt %14 : vector<1x128xf32>
    %16 = arith.mulf %12, %15 : vector<1x128xf32>
    %c0_12 = arith.constant 0 : index
    %c0_13 = arith.constant 0 : index
    %17 = vector.load %arg5[%c0_12, %c0_13] : memref<1x128xf32, #tpu.memory_space<vmem>>, vector<1x128xf32>
    %18 = arith.mulf %5, %16 : vector<1x128xf32>
    %19 = arith.subf %17, %18 : vector<1x128xf32>
    %c0_14 = arith.constant 0 : index
    %c0_15 = arith.constant 0 : index
    %20 = vector.load %arg1[%c0_14, %c0_15] : memref<128x128xbf16, #tpu.memory_space<vmem>>, vector<128x128xbf16>
    %21 = arith.extf %20 : vector<128x128xbf16> to vector<128x128xf32>
    %22 = vector.broadcast %16 : vector<1x128xf32> to vector<128x128xf32>
    %23 = arith.mulf %21, %22 : vector<128x128xf32>
    %24 = vector.broadcast %19 : vector<1x128xf32> to vector<128x128xf32>
    %25 = arith.addf %23, %24 : vector<128x128xf32>
    %c0_16 = arith.constant 0 : index
    %c0_17 = arith.constant 0 : index
    %26 = vector.load %arg6[%c0_16, %c0_17] : memref<128x128xf32, #tpu.memory_space<vmem>>, vector<128x128xf32>
    %27 = arith.addf %25, %26 : vector<128x128xf32>
    %cst_18 = arith.constant 0.000000e+00 : f32
    %28 = vector.broadcast %cst_18 : f32 to vector<128x128xf32>
    %29 = arith.maximumf %27, %28 : vector<128x128xf32>
    %c0_19 = arith.constant 0 : index
    %c0_20 = arith.constant 0 : index
    %30 = vector.load %arg7[%c0_19, %c0_20] : memref<128x128xf32, #tpu.memory_space<vmem>>, vector<128x128xf32>
    tpu.vector_store %arg7[%c0_19, %c0_20], %29 {strides = array<i32>} : memref<128x128xf32, #tpu.memory_space<vmem>>, vector<128x128xf32>,
    return
  }
  func.func @transform_0(%arg0: i32) -> (i32, i32) {
    %c0_i32 = arith.constant 0 : i32
    %c0_i32_0 = arith.constant 0 : i32
    return %arg0, %c0_i32 : i32, i32
  }
  func.func @transform_1(%arg0: i32) -> (i32, i32, i32) {
    %c0_i32 = arith.constant 0 : i32
    %c0_i32_0 = arith.constant 0 : i32
    %c0_i32_1 = arith.constant 0 : i32
    %c0_i32_2 = arith.constant 0 : i32
    return %c0_i32, %c0_i32_0, %c0_i32_1 : i32, i32, i32
  }
  func.func @transform_2(%arg0: i32) -> (i32, i32, i32) {
    %c0_i32 = arith.constant 0 : i32
    %c0_i32_0 = arith.constant 0 : i32
    %c0_i32_1 = arith.constant 0 : i32
    %c0_i32_2 = arith.constant 0 : i32
    return %c0_i32, %c0_i32_0, %c0_i32_1 : i32, i32, i32
  }
  func.func @transform_3(%arg0: i32) -> (i32, i32) {
    %c0_i32 = arith.constant 0 : i32
    %c0_i32_0 = arith.constant 0 : i32
    %c0_i32_1 = arith.constant 0 : i32
    return %c0_i32, %c0_i32_0 : i32, i32
  }
  func.func @transform_4(%arg0: i32) -> (i32, i32) {
    %c0_i32 = arith.constant 0 : i32
    %c0_i32_0 = arith.constant 0 : i32
    %c0_i32_1 = arith.constant 0 : i32
    return %c0_i32, %c0_i32_0 : i32, i32
  }
  func.func @transform_5(%arg0: i32) -> (i32, i32) {
    %c0_i32 = arith.constant 0 : i32
    %c0_i32_0 = arith.constant 0 : i32
    return %arg0, %c0_i32 : i32, i32
  }
  func.func @transform_6(%arg0: i32) -> (i32, i32) {
    %c0_i32 = arith.constant 0 : i32
    %c0_i32_0 = arith.constant 0 : i32
    return %arg0, %c0_i32 : i32, i32
  }
}

</mosaic_0001>

<llo_original>
// kernel: residual_block.9
$region0: #{residual_block.9}
  #allocation0 [shape = 'u32[]', space=smem, size = 0x4, offset = 0x4, fixed_abs, tag = 'smem constant byte address 0x4 - core index']
  #allocation1 [shape = 'u32[144,128]{1,0:T(1,128)}', space=vmem, size = 0x12000, scoped, tag = 'internal scratch']
  %s0 = inlined_call_operand.vmem [shape: bf16[128,128], index: 0, kind: input, shape index: {}]
  %s1 = inlined_call_operand.vmem [shape: f32[1,1,128], index: 1, kind: input, shape index: {}]
  %s2 = inlined_call_operand.vmem [shape: f32[1,1,128], index: 2, kind: input, shape index: {}]
  %s3 = inlined_call_operand.vmem [shape: f32[1,128], index: 3, kind: input, shape index: {}]
  %s4 = inlined_call_operand.vmem [shape: f32[1,128], index: 4, kind: input, shape index: {}]
  %s5 = inlined_call_operand.vmem [shape: bf16[128,128], index: 5, kind: output, shape index: {}]
  %s6 = sld [smem:[#allocation0]]
  $region30: #{residual_block.9} parent=0
    _
  %s8 = ssub.s32 1, %s6
  %s9 = scalar_select 0, %s8, %s6
  // Predicated region
  $region2: #{residual_block.9} parent=0 // pred_check
    _
  $region3: #{residual_block.9} parent=0 // pred_check_branch
    %11 = sbr.rel (0) target = $region5
  $region4: #{residual_block.9} parent=0 // pred_region
    _
  $region5: #{residual_block.9} parent=0 // pred_fallthru
    _
  // Predicated region
  $region6: #{residual_block.9} parent=0 // pred_check
    _
  $region7: #{residual_block.9} parent=0 // pred_check_branch
    %13 = sbr.rel (0) target = $region9
  $region8: #{residual_block.9} parent=0 // pred_region
    _
  $region9: #{residual_block.9} parent=0 // pred_fallthru
    _
  // Predicated region
  $region10: #{residual_block.9} parent=0 // pred_check
    _
  $region11: #{residual_block.9} parent=0 // pred_check_branch
    %15 = sbr.rel (0) target = $region13
  $region12: #{residual_block.9} parent=0 // pred_region
    _
  $region13: #{residual_block.9} parent=0 // pred_fallthru
    _
  // Predicated region
  $region14: #{residual_block.9} parent=0 // pred_check
    _
  $region15: #{residual_block.9} parent=0 // pred_check_branch
    %17 = sbr.rel (0) target = $region17
  $region16: #{residual_block.9} parent=0 // pred_region
    _
  $region17: #{residual_block.9} parent=0 // pred_fallthru
    _
  // Predicated region
  $region18: #{residual_block.9} parent=0 // pred_check
    _
  $region19: #{residual_block.9} parent=0 // pred_check_branch
    %19 = sbr.rel (0) target = $region21
  $region20: #{residual_block.9} parent=0 // pred_region
    _
  $region21: #{residual_block.9} parent=0 // pred_fallthru
    _
  %v20 = vld [vmem:[%s1] sm:$0x1]
  %v21 = vadd.f32 %v20, 0.0
  %v22 = vld [vmem:[%s2] sm:$0x1]
  %v23 = vadd.f32 %v22, 0.0
  %v24 = vmul.f32 %v21, 0.0078125
  %v25 = vmul.f32 %v23, 0.0078125
  %v26 = vmul.f32 %v24, %v24
  %v27 = vsub.f32 %v25, %v26
  %v28 = vmax.f32 %v27, 0.0
  %v29 = vld [vmem:[%s3] sm:$0x1]
  %v30 = vadd.f32 %v28, 1e-05
  %v31 = vrsqrt.pop %v30
  %v32 = vmul.f32 %v29, %v31
  %v33 = vld [vmem:[%s4] sm:$0x1]
  %v34 = vmul.f32 %v24, %v32
  %v35 = vsub.f32 %v33, %v34
  %v36 = vld [vmem:[%s0] sm:$0xf]
  %v37 = vld [vmem:[%s0 + $0x4] sm:$0xf]
  %v38 = vld [vmem:[%s0 + $0x8] sm:$0xf]
  %v39 = vld [vmem:[%s0 + $0xc] sm:$0xf]
  %v40 = vld [vmem:[%s0 + $0x10] sm:$0xf]
  %v41 = vld [vmem:[%s0 + $0x14] sm:$0xf]
  %v42 = vld [vmem:[%s0 + $0x18] sm:$0xf]
  %v43 = vld [vmem:[%s0 + $0x1c] sm:$0xf]
  %v44 = vld [vmem:[%s0 + $0x20] sm:$0xf]
  %v45 = vld [vmem:[%s0 + $0x24] sm:$0xf]
  %v46 = vld [vmem:[%s0 + $0x28] sm:$0xf]
  %v47 = vld [vmem:[%s0 + $0x2c] sm:$0xf]
  %v48 = vld [vmem:[%s0 + $0x30] sm:$0xf]
  %v49 = vld [vmem:[%s0 + $0x34] sm:$0xf]
  %v50 = vld [vmem:[%s0 + $0x38] sm:$0xf]
  %v51 = vld [vmem:[%s0 + $0x3c] sm:$0xf]
  %v52 = vunpack.c.l.bf16 %v36
  %v53 = vunpack.c.l.bf16 %v37
  %v54 = vunpack.c.l.bf16 %v38
  %v55 = vunpack.c.l.bf16 %v39
  %v56 = vunpack.c.l.bf16 %v40
  %v57 = vunpack.c.l.bf16 %v41
  %v58 = vunpack.c.l.bf16 %v42
  %v59 = vunpack.c.l.bf16 %v43
  %v60 = vunpack.c.l.bf16 %v44
  %v61 = vunpack.c.l.bf16 %v45
  %v62 = vunpack.c.l.bf16 %v46
  %v63 = vunpack.c.l.bf16 %v47
  %v64 = vunpack.c.l.bf16 %v48
  %v65 = vunpack.c.l.bf16 %v49
  %v66 = vunpack.c.l.bf16 %v50
  %v67 = vunpack.c.l.bf16 %v51
  %v69 = vlaneseq
  %v70 = vshrl.u32 %v69, 7
  %v71 = vsub.s32 0, %v70
  %v72 = vrot.slane %v32, %v71
  %v74 = vmul.f32 %v52, %v72
  %v75 = vmul.f32 %v53, %v72
  %v76 = vmul.f32 %v54, %v72
  %v77 = vmul.f32 %v55, %v72
  %v78 = vmul.f32 %v56, %v72
  %v79 = vmul.f32 %v57, %v72
  %v80 = vmul.f32 %v58, %v72
  %v81 = vmul.f32 %v59, %v72
  %v82 = vmul.f32 %v60, %v72
  %v83 = vmul.f32 %v61, %v72
  %v84 = vmul.f32 %v62, %v72
  %v85 = vmul.f32 %v63, %v72
  %v86 = vmul.f32 %v64, %v72
  %v87 = vmul.f32 %v65, %v72
  %v88 = vmul.f32 %v66, %v72
  %v89 = vmul.f32 %v67, %v72
  %v91 = vlaneseq
  %v92 = vshrl.u32 %v91, 7
  %v93 = vsub.s32 0, %v92
  %v94 = vrot.slane %v35, %v93
  %v96 = vadd.f32 %v74, %v94
  %v97 = vadd.f32 %v75, %v94
  %v98 = vadd.f32 %v76, %v94
  %v99 = vadd.f32 %v77, %v94
  %v100 = vadd.f32 %v78, %v94
  %v101 = vadd.f32 %v79, %v94
  %v102 = vadd.f32 %v80, %v94
  %v103 = vadd.f32 %v81, %v94
  %v104 = vadd.f32 %v82, %v94
  %v105 = vadd.f32 %v83, %v94
  %v106 = vadd.f32 %v84, %v94
  %v107 = vadd.f32 %v85, %v94
  %v108 = vadd.f32 %v86, %v94
  %v109 = vadd.f32 %v87, %v94
  %v110 = vadd.f32 %v88, %v94
  %v111 = vadd.f32 %v89, %v94
  %v112 = vmax.f32 %v96, 0.0
  %v113 = vmax.f32 %v97, 0.0
  %v114 = vmax.f32 %v98, 0.0
  %v115 = vmax.f32 %v99, 0.0
  %v116 = vmax.f32 %v100, 0.0
  %v117 = vmax.f32 %v101, 0.0
  %v118 = vmax.f32 %v102, 0.0
  %v119 = vmax.f32 %v103, 0.0
  %v120 = vmax.f32 %v104, 0.0
  %v121 = vmax.f32 %v105, 0.0
  %v122 = vmax.f32 %v106, 0.0
  %v123 = vmax.f32 %v107, 0.0
  %v124 = vmax.f32 %v108, 0.0
  %v125 = vmax.f32 %v109, 0.0
  %v126 = vmax.f32 %v110, 0.0
  %v127 = vmax.f32 %v111, 0.0
  %v128 = vpack.c.bf16 %v113, %v112
  %v129 = vpack.c.bf16 %v115, %v114
  %v130 = vpack.c.bf16 %v117, %v116
  %v131 = vpack.c.bf16 %v119, %v118
  %v132 = vpack.c.bf16 %v121, %v120
  %v133 = vpack.c.bf16 %v123, %v122
  %v134 = vpack.c.bf16 %v125, %v124
  %v135 = vpack.c.bf16 %v127, %v126
  %v144 = vunpack.c.l.b16 %v128
  %v145 = vunpack.c.h.b16 %v128
  %v146 = vunpack.c.l.b16 %v129
  %v147 = vunpack.c.h.b16 %v129
  %v148 = vunpack.c.l.b16 %v130
  %v149 = vunpack.c.h.b16 %v130
  %v150 = vunpack.c.l.b16 %v131
  %v151 = vunpack.c.h.b16 %v131
  %v152 = vunpack.c.l.b16 %v132
  %v153 = vunpack.c.h.b16 %v132
  %v154 = vunpack.c.l.b16 %v133
  %v155 = vunpack.c.h.b16 %v133
  %v156 = vunpack.c.l.b16 %v134
  %v157 = vunpack.c.h.b16 %v134
  %v158 = vunpack.c.l.b16 %v135
  %v159 = vunpack.c.h.b16 %v135
  %v160 = vpack.c.b16 %v144, %v144
  %v161 = vpack.c.b16 %v145, %v145
  %v162 = vpack.c.b16 %v146, %v146
  %v163 = vpack.c.b16 %v147, %v147
  %v164 = vpack.c.b16 %v148, %v148
  %v165 = vpack.c.b16 %v149, %v149
  %v166 = vpack.c.b16 %v150, %v150
  %v167 = vpack.c.b16 %v151, %v151
  %v168 = vpack.c.b16 %v152, %v152
  %v169 = vpack.c.b16 %v153, %v153
  %v170 = vpack.c.b16 %v154, %v154
  %v171 = vpack.c.b16 %v155, %v155
  %v172 = vpack.c.b16 %v156, %v156
  %v173 = vpack.c.b16 %v157, %v157
  %v174 = vpack.c.b16 %v158, %v158
  %v175 = vpack.c.b16 %v159, %v159
  %192 = vst [vmem:[%s5] sm:$0xf] %v160
  %193 = vst [vmem:[%s5 + $0x4] sm:$0xf] %v161
  %194 = vst [vmem:[%s5 + $0x8] sm:$0xf] %v162
  %195 = vst [vmem:[%s5 + $0xc] sm:$0xf] %v163
  %196 = vst [vmem:[%s5 + $0x10] sm:$0xf] %v164
  %197 = vst [vmem:[%s5 + $0x14] sm:$0xf] %v165
  %198 = vst [vmem:[%s5 + $0x18] sm:$0xf] %v166
  %199 = vst [vmem:[%s5 + $0x1c] sm:$0xf] %v167
  %200 = vst [vmem:[%s5 + $0x20] sm:$0xf] %v168
  %201 = vst [vmem:[%s5 + $0x24] sm:$0xf] %v169
  %202 = vst [vmem:[%s5 + $0x28] sm:$0xf] %v170
  %203 = vst [vmem:[%s5 + $0x2c] sm:$0xf] %v171
  %204 = vst [vmem:[%s5 + $0x30] sm:$0xf] %v172
  %205 = vst [vmem:[%s5 + $0x34] sm:$0xf] %v173
  %206 = vst [vmem:[%s5 + $0x38] sm:$0xf] %v174
  %207 = vst [vmem:[%s5 + $0x3c] sm:$0xf] %v175
  // Predicated region
  $region22: #{residual_block.9} parent=0 // pred_check
    _
  $region23: #{residual_block.9} parent=0 // pred_check_branch
    %209 = sbr.rel (0) target = $region25
  $region24: #{residual_block.9} parent=0 // pred_region
    _
  $region25: #{residual_block.9} parent=0 // pred_fallthru
    _
  // Predicated region
  $region26: #{residual_block.9} parent=0 // pred_check
    _
  $region27: #{residual_block.9} parent=0 // pred_check_branch
    %211 = sbr.rel (0) target = $region29
  $region28: #{residual_block.9} parent=0 // pred_region
    _
  $region29: #{residual_block.9} parent=0 // pred_fallthru
    _

// kernel: residual_block.8
$region0: #{residual_block.8}
  #allocation0 [shape = 'u32[]', space=smem, size = 0x4, offset = 0x4, fixed_abs, tag = 'smem constant byte address 0x4 - core index']
  #allocation1 [shape = 'u32[144,128]{1,0:T(1,128)}', space=vmem, size = 0x12000, scoped, tag = 'internal scratch']
  %s0 = inlined_call_operand.vmem [shape: bf16[128,128], index: 0, kind: input, shape index: {}]
  %s1 = inlined_call_operand.vmem [shape: bf16[128,128], index: 1, kind: input, shape index: {}]
  %s2 = inlined_call_operand.vmem [shape: bf16[128,128], index: 2, kind: output, shape index: {0}]
  %s3 = inlined_call_operand.vmem [shape: f32[1,1,128], index: 3, kind: output, shape index: {1}]
  %s4 = inlined_call_operand.vmem [shape: f32[1,1,128], index: 4, kind: output, shape index: {2}]
  %5 = xla_tuple %s2, %s3, %s4
  %s6 = sld [smem:[#allocation0]]
  $region38: #{residual_block.8} parent=0
    _
  %s8 = ssub.s32 1, %s6
  %s9 = scalar_select 0, %s8, %s6
  // Predicated region
  $region2: #{residual_block.8} parent=0 // pred_check
    _
  $region3: #{residual_block.8} parent=0 // pred_check_branch
    %11 = sbr.rel (0) target = $region5
  $region4: #{residual_block.8} parent=0 // pred_region
    %s12 = sadd.s32 0, 0
    %s13 = smul.u32 16, %s12
    %p14 = scmp.lt.s32.totalorder %s13, 15
    %s15 = scalar_select %p14, %s13, 15
    %s16 = smul.addr %s15, 4
    %s17 = scalar_lea.vmem %s0, %s16
    %s18 = sadd.s32 0, 0
    %s19 = smul.u32 16, %s18
  $region5: #{residual_block.8} parent=0 // pred_fallthru
    _
  // Predicated region
  $region6: #{residual_block.8} parent=0 // pred_check
    _
  $region7: #{residual_block.8} parent=0 // pred_check_branch
    %21 = sbr.rel (0) target = $region9
  $region8: #{residual_block.8} parent=0 // pred_region
    _
  $region9: #{residual_block.8} parent=0 // pred_fallthru
    _
  %s22 = sadd.s32 0, 0
  %s23 = smul.u32 16, %s22
  %p24 = scmp.lt.s32.totalorder %s23, 15
  %s25 = scalar_select %p24, %s23, 15
  %s26 = smul.addr %s25, 4
  %s27 = scalar_lea.vmem %s0, %s26
  %s28 = sadd.s32 0, 0
  %s29 = smul.u32 16, %s28
  %p30 = scmp.lt.s32.totalorder %s29, 15
  %s31 = scalar_select %p30, %s29, 15
  %s32 = smul.addr %s31, 4
  %s33 = scalar_lea.vmem %s2, %s32
  %s34 = sadd.s32 0, 0
  %s35 = smul.u32 16, %s34
  %p36 = scmp.lt.s32.totalorder %s35, 15
  %s37 = scalar_select %p36, %s35, 15
  %s38 = smul.addr %s37, 4
  %s39 = scalar_lea.vmem %s0, %s38
  %s40 = sadd.s32 0, 0
  %s41 = smul.u32 16, %s40
  %s42 = sadd.s32 0, 0
  %s43 = smul.u32 16, %s42
  %p44 = scmp.lt.s32.totalorder %s43, 15
  %s45 = scalar_select %p44, %s43, 15
  %s46 = smul.addr %s45, 4
  %s47 = scalar_lea.vmem %s2, %s46
  %s48 = sadd.s32 0, 0
  %s49 = smul.u32 16, %s48
  %p51 = scmp.eq.s32.totalorder 0, 0
  // Predicated region
  $region10: #{residual_block.8} parent=0 // pred_check
    %p52 = pneg %p51
  $region11: #{residual_block.8} parent=0 // pred_check_branch
    %54 = sbr.rel (%p52) target = $region13
  $region12: #{residual_block.8} parent=0 // pred_region
    %55 = vst [vmem:[%s3] sm:$0x1] 0.0
    %56 = vst [vmem:[%s4] sm:$0x1] 0.0
  $region13: #{residual_block.8} parent=0 // pred_fallthru
    _
  %v57 = vld [vmem:[%s39] sm:$0xf]
  %v58 = vld [vmem:[%s39 + $0x4] sm:$0xf]
  %v59 = vld [vmem:[%s39 + $0x8] sm:$0xf]
  %v60 = vld [vmem:[%s39 + $0xc] sm:$0xf]
  %v61 = vld [vmem:[%s39 + $0x10] sm:$0xf]
  %v62 = vld [vmem:[%s39 + $0x14] sm:$0xf]
  %v63 = vld [vmem:[%s39 + $0x18] sm:$0xf]
  %v64 = vld [vmem:[%s39 + $0x1c] sm:$0xf]
  %v65 = vld [vmem:[%s39 + $0x20] sm:$0xf]
  %v66 = vld [vmem:[%s39 + $0x24] sm:$0xf]
  %v67 = vld [vmem:[%s39 + $0x28] sm:$0xf]
  %v68 = vld [vmem:[%s39 + $0x2c] sm:$0xf]
  %v69 = vld [vmem:[%s39 + $0x30] sm:$0xf]
  %v70 = vld [vmem:[%s39 + $0x34] sm:$0xf]
  %v71 = vld [vmem:[%s39 + $0x38] sm:$0xf]
  %v72 = vld [vmem:[%s39 + $0x3c] sm:$0xf]
  %v73 = vld [vmem:[%s1] sm:$0xf]
  %v74 = vld [vmem:[%s1 + $0x4] sm:$0xf]
  %v75 = vld [vmem:[%s1 + $0x8] sm:$0xf]
  %v76 = vld [vmem:[%s1 + $0xc] sm:$0xf]
  %v77 = vld [vmem:[%s1 + $0x10] sm:$0xf]
  %v78 = vld [vmem:[%s1 + $0x14] sm:$0xf]
  %v79 = vld [vmem:[%s1 + $0x18] sm:$0xf]
  %v80 = vld [vmem:[%s1 + $0x1c] sm:$0xf]
  %v81 = vld [vmem:[%s1 + $0x20] sm:$0xf]
  %v82 = vld [vmem:[%s1 + $0x24] sm:$0xf]
  %v83 = vld [vmem:[%s1 + $0x28] sm:$0xf]
  %v84 = vld [vmem:[%s1 + $0x2c] sm:$0xf]
  %v85 = vld [vmem:[%s1 + $0x30] sm:$0xf]
  %v86 = vld [vmem:[%s1 + $0x34] sm:$0xf]
  %v87 = vld [vmem:[%s1 + $0x38] sm:$0xf]
  %v88 = vld [vmem:[%s1 + $0x3c] sm:$0xf]
  %v105 = vunpack.c.l.b16 %v57
  %v106 = vunpack.c.l.b16 %v58
  %v107 = vunpack.c.l.b16 %v59
  %v108 = vunpack.c.l.b16 %v60
  %v109 = vunpack.c.l.b16 %v61
  %v110 = vunpack.c.l.b16 %v62
  %v111 = vunpack.c.l.b16 %v63
  %v112 = vunpack.c.l.b16 %v64
  %v113 = vunpack.c.l.b16 %v65
  %v114 = vunpack.c.l.b16 %v66
  %v115 = vunpack.c.l.b16 %v67
  %v116 = vunpack.c.l.b16 %v68
  %v117 = vunpack.c.l.b16 %v69
  %v118 = vunpack.c.l.b16 %v70
  %v119 = vunpack.c.l.b16 %v71
  %v120 = vunpack.c.l.b16 %v72
  %v121 = vpack.c.b16 %v106, %v105
  %v122 = vpack.c.b16 %v108, %v107
  %v123 = vpack.c.b16 %v110, %v109
  %v124 = vpack.c.b16 %v112, %v111
  %v125 = vpack.c.b16 %v114, %v113
  %v126 = vpack.c.b16 %v116, %v115
  %v127 = vpack.c.b16 %v118, %v117
  %v128 = vpack.c.b16 %v120, %v119
  %v153 = vunpack.c.l.b16 %v73
  %v154 = vunpack.c.l.b16 %v74
  %v155 = vunpack.c.l.b16 %v75
  %v156 = vunpack.c.l.b16 %v76
  %v157 = vunpack.c.l.b16 %v77
  %v158 = vunpack.c.l.b16 %v78
  %v159 = vunpack.c.l.b16 %v79
  %v160 = vunpack.c.l.b16 %v80
  %v161 = vunpack.c.l.b16 %v81
  %v162 = vunpack.c.l.b16 %v82
  %v163 = vunpack.c.l.b16 %v83
  %v164 = vunpack.c.l.b16 %v84
  %v165 = vunpack.c.l.b16 %v85
  %v166 = vunpack.c.l.b16 %v86
  %v167 = vunpack.c.l.b16 %v87
  %v168 = vunpack.c.l.b16 %v88
  %v169 = vpack.c.b16 %v154, %v153
  %v170 = vpack.c.b16 %v156, %v155
  %v171 = vpack.c.b16 %v158, %v157
  %v172 = vpack.c.b16 %v160, %v159
  %v173 = vpack.c.b16 %v162, %v161
  %v174 = vpack.c.b16 %v164, %v163
  %v175 = vpack.c.b16 %v166, %v165
  %v176 = vpack.c.b16 %v168, %v167
  %185 = vmatprep.subr.bf16.mxu0 0
  %186 = vmatpush1.bf16.msra.mxu0 %v176
  %187 = vmatprep.subr.bf16.mxu0 0
  %188 = vmatpush1.bf16.msra.mxu0 %v175
  %189 = vmatprep.subr.bf16.mxu0 0
  %190 = vmatpush1.bf16.msra.mxu0 %v174
  %191 = vmatprep.subr.bf16.mxu0 0
  %192 = vmatpush1.bf16.msra.mxu0 %v173
  %193 = vmatprep.subr.bf16.mxu0 0
  %194 = vmatpush1.bf16.msra.mxu0 %v172
  %195 = vmatprep.subr.bf16.mxu0 0
  %196 = vmatpush1.bf16.msra.mxu0 %v171
  %197 = vmatprep.subr.bf16.mxu0 0
  %198 = vmatpush1.bf16.msra.mxu0 %v170
  %199 = vmatprep.subr.bf16.mxu0 0
  %200 = vmatpush1.bf16.msra.mxu0 %v169
  %201 = vmatprep.subr.bf16.mxu0 0
  %202 = vmatpush2.bf16.msra.mxu0 0
  %203 = vmatprep.subr.bf16.mxu0 0
  %204 = vmatpush2.bf16.msra.mxu0 0
  %205 = vmatprep.subr.bf16.mxu0 0
  %206 = vmatpush2.bf16.msra.mxu0 0
  %207 = vmatprep.subr.bf16.mxu0 0
  %208 = vmatpush2.bf16.msra.mxu0 0
  %209 = vmatprep.subr.bf16.mxu0 0
  %210 = vmatpush2.bf16.msra.mxu0 0
  %211 = vmatprep.subr.bf16.mxu0 0
  %212 = vmatpush2.bf16.msra.mxu0 0
  %213 = vmatprep.subr.bf16.mxu0 0
  %214 = vmatpush2.bf16.msra.mxu0 0
  %215 = vmatprep.subr.bf16.mxu0 0
  %216 = vmatpush2.bf16.msra.mxu0 0
  %217 = vmatprep.mubr.bf16.mxu0 0
  %218 = vmatmul.mubr.bf16.gmra.mxu0 %v121
  %v219 = vpop.f32.mrf.mxu0
  %v220 = vadd.f32 0.0, %v219
  %v221 = vpop.f32.mrf.mxu0
  %v222 = vpop.f32.mrf.mxu0
  %v223 = vadd.f32 0.0, %v222
  %v224 = vpop.f32.mrf.mxu0
  %225 = vmatprep.mubr.bf16.mxu0 0
  %226 = vmatmul.mubr.bf16.gmra.mxu0 %v122
  %v227 = vpop.f32.mrf.mxu0
  %v228 = vadd.f32 0.0, %v227
  %v229 = vpop.f32.mrf.mxu0
  %v230 = vpop.f32.mrf.mxu0
  %v231 = vadd.f32 0.0, %v230
  %v232 = vpop.f32.mrf.mxu0
  %233 = vmatprep.mubr.bf16.mxu0 0
  %234 = vmatmul.mubr.bf16.gmra.mxu0 %v123
  %v235 = vpop.f32.mrf.mxu0
  %v236 = vadd.f32 0.0, %v235
  %v237 = vpop.f32.mrf.mxu0
  %v238 = vpop.f32.mrf.mxu0
  %v239 = vadd.f32 0.0, %v238
  %v240 = vpop.f32.mrf.mxu0
  %241 = vmatprep.mubr.bf16.mxu0 0
  %242 = vmatmul.mubr.bf16.gmra.mxu0 %v124
  %v243 = vpop.f32.mrf.mxu0
  %v244 = vadd.f32 0.0, %v243
  %v245 = vpop.f32.mrf.mxu0
  %v246 = vpop.f32.mrf.mxu0
  %v247 = vadd.f32 0.0, %v246
  %v248 = vpop.f32.mrf.mxu0
  %249 = vmatprep.mubr.bf16.mxu0 0
  %250 = vmatmul.mubr.bf16.gmra.mxu0 %v125
  %v251 = vpop.f32.mrf.mxu0
  %v252 = vadd.f32 0.0, %v251
  %v253 = vpop.f32.mrf.mxu0
  %v254 = vpop.f32.mrf.mxu0
  %v255 = vadd.f32 0.0, %v254
  %v256 = vpop.f32.mrf.mxu0
  %257 = vmatprep.mubr.bf16.mxu0 0
  %258 = vmatmul.mubr.bf16.gmra.mxu0 %v126
  %v259 = vpop.f32.mrf.mxu0
  %v260 = vadd.f32 0.0, %v259
  %v261 = vpop.f32.mrf.mxu0
  %v262 = vpop.f32.mrf.mxu0
  %v263 = vadd.f32 0.0, %v262
  %v264 = vpop.f32.mrf.mxu0
  %265 = vmatprep.mubr.bf16.mxu0 0
  %266 = vmatmul.mubr.bf16.gmra.mxu0 %v127
  %v267 = vpop.f32.mrf.mxu0
  %v268 = vadd.f32 0.0, %v267
  %v269 = vpop.f32.mrf.mxu0
  %v270 = vpop.f32.mrf.mxu0
  %v271 = vadd.f32 0.0, %v270
  %v272 = vpop.f32.mrf.mxu0
  %273 = vmatprep.mubr.bf16.mxu0 0
  %274 = vmatmul.mubr.bf16.gmra.mxu0 %v128
  %v275 = vpop.f32.mrf.mxu0
  %v276 = vadd.f32 0.0, %v275
  %v277 = vpop.f32.mrf.mxu0
  %v278 = vpop.f32.mrf.mxu0
  %v279 = vadd.f32 0.0, %v278
  %v280 = vpop.f32.mrf.mxu0
  %281 = vdwg.mxu0
  %v282 = vpack.c.bf16 %v223, %v220
  %v283 = vpack.c.bf16 %v231, %v228
  %v284 = vpack.c.bf16 %v239, %v236
  %v285 = vpack.c.bf16 %v247, %v244
  %v286 = vpack.c.bf16 %v255, %v252
  %v287 = vpack.c.bf16 %v263, %v260
  %v288 = vpack.c.bf16 %v271, %v268
  %v289 = vpack.c.bf16 %v279, %v276
  %v298 = vunpack.c.l.b16 %v282
  %v299 = vunpack.c.h.b16 %v282
  %v300 = vunpack.c.l.b16 %v283
  %v301 = vunpack.c.h.b16 %v283
  %v302 = vunpack.c.l.b16 %v284
  %v303 = vunpack.c.h.b16 %v284
  %v304 = vunpack.c.l.b16 %v285
  %v305 = vunpack.c.h.b16 %v285
  %v306 = vunpack.c.l.b16 %v286
  %v307 = vunpack.c.h.b16 %v286
  %v308 = vunpack.c.l.b16 %v287
  %v309 = vunpack.c.h.b16 %v287
  %v310 = vunpack.c.l.b16 %v288
  %v311 = vunpack.c.h.b16 %v288
  %v312 = vunpack.c.l.b16 %v289
  %v313 = vunpack.c.h.b16 %v289
  %v314 = vpack.c.b16 %v298, %v298
  %v315 = vpack.c.b16 %v299, %v299
  %v316 = vpack.c.b16 %v300, %v300
  %v317 = vpack.c.b16 %v301, %v301
  %v318 = vpack.c.b16 %v302, %v302
  %v319 = vpack.c.b16 %v303, %v303
  %v320 = vpack.c.b16 %v304, %v304
  %v321 = vpack.c.b16 %v305, %v305
  %v322 = vpack.c.b16 %v306, %v306
  %v323 = vpack.c.b16 %v307, %v307
  %v324 = vpack.c.b16 %v308, %v308
  %v325 = vpack.c.b16 %v309, %v309
  %v326 = vpack.c.b16 %v310, %v310
  %v327 = vpack.c.b16 %v311, %v311
  %v328 = vpack.c.b16 %v312, %v312
  %v329 = vpack.c.b16 %v313, %v313
  %346 = vst [vmem:[%s47] sm:$0xf] %v314
  %347 = vst [vmem:[%s47 + $0x4] sm:$0xf] %v315
  %348 = vst [vmem:[%s47 + $0x8] sm:$0xf] %v316
  %349 = vst [vmem:[%s47 + $0xc] sm:$0xf] %v317
  %350 = vst [vmem:[%s47 + $0x10] sm:$0xf] %v318
  %351 = vst [vmem:[%s47 + $0x14] sm:$0xf] %v319
  %352 = vst [vmem:[%s47 + $0x18] sm:$0xf] %v320
  %353 = vst [vmem:[%s47 + $0x1c] sm:$0xf] %v321
  %354 = vst [vmem:[%s47 + $0x20] sm:$0xf] %v322
  %355 = vst [vmem:[%s47 + $0x24] sm:$0xf] %v323
  %356 = vst [vmem:[%s47 + $0x28] sm:$0xf] %v324
  %357 = vst [vmem:[%s47 + $0x2c] sm:$0xf] %v325
  %358 = vst [vmem:[%s47 + $0x30] sm:$0xf] %v326
  %359 = vst [vmem:[%s47 + $0x34] sm:$0xf] %v327
  %360 = vst [vmem:[%s47 + $0x38] sm:$0xf] %v328
  %361 = vst [vmem:[%s47 + $0x3c] sm:$0xf] %v329
  %v362 = vld [vmem:[%s3] sm:$0x1]
  %v363 = vadd.f32 %v220, %v223
  %v364 = vadd.f32 %v363, %v228
  %v365 = vadd.f32 %v364, %v231
  %v366 = vadd.f32 %v365, %v236
  %v367 = vadd.f32 %v366, %v239
  %v368 = vadd.f32 %v367, %v244
  %v369 = vadd.f32 %v368, %v247
  %v370 = vadd.f32 %v369, %v252
  %v371 = vadd.f32 %v370, %v255
  %v372 = vadd.f32 %v371, %v260
  %v373 = vadd.f32 %v372, %v263
  %v374 = vadd.f32 %v373, %v268
  %v375 = vadd.f32 %v374, %v271
  %v376 = vadd.f32 %v375, %v276
  %v377 = vadd.f32 %v376, %v279
  %v378 = vrot.slane %v377, 4
  %v379 = vadd.f32 %v377, %v378
  %v380 = vrot.slane %v379, 2
  %v381 = vadd.f32 %v379, %v380
  %v382 = vrot.slane %v381, 1
  %v383 = vadd.f32 %v381, %v382
  %v384 = vadd.f32 %v362, %v383
  %385 = vst [vmem:[%s3] sm:$0x1] %v384
  %v386 = vld [vmem:[%s4] sm:$0x1]
  %v387 = vmul.f32 %v220, %v220
  %v388 = vmul.f32 %v223, %v223
  %v389 = vmul.f32 %v228, %v228
  %v390 = vmul.f32 %v231, %v231
  %v391 = vmul.f32 %v236, %v236
  %v392 = vmul.f32 %v239, %v239
  %v393 = vmul.f32 %v244, %v244
  %v394 = vmul.f32 %v247, %v247
  %v395 = vmul.f32 %v252, %v252
  %v396 = vmul.f32 %v255, %v255
  %v397 = vmul.f32 %v260, %v260
  %v398 = vmul.f32 %v263, %v263
  %v399 = vmul.f32 %v268, %v268
  %v400 = vmul.f32 %v271, %v271
  %v401 = vmul.f32 %v276, %v276
  %v402 = vmul.f32 %v279, %v279
  %v403 = vadd.f32 %v387, %v388
  %v404 = vadd.f32 %v403, %v389
  %v405 = vadd.f32 %v404, %v390
  %v406 = vadd.f32 %v405, %v391
  %v407 = vadd.f32 %v406, %v392
  %v408 = vadd.f32 %v407, %v393
  %v409 = vadd.f32 %v408, %v394
  %v410 = vadd.f32 %v409, %v395
  %v411 = vadd.f32 %v410, %v396
  %v412 = vadd.f32 %v411, %v397
  %v413 = vadd.f32 %v412, %v398
  %v414 = vadd.f32 %v413, %v399
  %v415 = vadd.f32 %v414, %v400
  %v416 = vadd.f32 %v415, %v401
  %v417 = vadd.f32 %v416, %v402
  %v418 = vrot.slane %v417, 4
  %v419 = vadd.f32 %v417, %v418
  %v420 = vrot.slane %v419, 2
  %v421 = vadd.f32 %v419, %v420
  %v422 = vrot.slane %v421, 1
  %v423 = vadd.f32 %v421, %v422
  %v424 = vadd.f32 %v386, %v423
  %425 = vst [vmem:[%s4] sm:$0x1] %v424
  %s426 = sadd.s32 0, 0
  %s427 = smul.u32 16, %s426
  %p428 = scmp.lt.s32.totalorder %s427, 15
  %s429 = scalar_select %p428, %s427, 15
  %s430 = smul.addr %s429, 4
  %s431 = scalar_lea.vmem %s2, %s430
  // Predicated region
  $region14: #{residual_block.8} parent=0 // pred_check
    _
  $region15: #{residual_block.8} parent=0 // pred_check_branch
    %433 = sbr.rel (0) target = $region17
  $region16: #{residual_block.8} parent=0 // pred_region
    %s434 = sadd.s32 0, 0
    %s435 = smul.u32 16, %s434
  $region17: #{residual_block.8} parent=0 // pred_fallthru
    _
  // Predicated region
  $region18: #{residual_block.8} parent=0 // pred_check
    _
  $region19: #{residual_block.8} parent=0 // pred_check_branch
    %437 = sbr.rel (0) target = $region21
  $region20: #{residual_block.8} parent=0 // pred_region
    _
  $region21: #{residual_block.8} parent=0 // pred_fallthru
    _
  // Predicated region
  $region22: #{residual_block.8} parent=0 // pred_check
    _
  $region23: #{residual_block.8} parent=0 // pred_check_branch
    %439 = sbr.rel (0) target = $region25
  $region24: #{residual_block.8} parent=0 // pred_region
    _
  $region25: #{residual_block.8} parent=0 // pred_fallthru
    _
  // Predicated region
  $region26: #{residual_block.8} parent=0 // pred_check
    _
  $region27: #{residual_block.8} parent=0 // pred_check_branch
    %441 = sbr.rel (0) target = $region29
  $region28: #{residual_block.8} parent=0 // pred_region
    %s442 = sadd.s32 0, 0
    %s443 = smul.u32 16, %s442
    %p444 = scmp.lt.s32.totalorder %s443, 15
    %s445 = scalar_select %p444, %s443, 15
    %s446 = smul.addr %s445, 4
    %s447 = scalar_lea.vmem %s2, %s446
  $region29: #{residual_block.8} parent=0 // pred_fallthru
    _
  // Predicated region
  $region30: #{residual_block.8} parent=0 // pred_check
    _
  $region31: #{residual_block.8} parent=0 // pred_check_branch
    %449 = sbr.rel (0) target = $region33
  $region32: #{residual_block.8} parent=0 // pred_region
    _
  $region33: #{residual_block.8} parent=0 // pred_fallthru
    _
  // Predicated region
  $region34: #{residual_block.8} parent=0 // pred_check
    _
  $region35: #{residual_block.8} parent=0 // pred_check_branch
    %451 = sbr.rel (0) target = $region37
  $region36: #{residual_block.8} parent=0 // pred_region
    _
  $region37: #{residual_block.8} parent=0 // pred_fallthru
    _

// kernel: residual_block.7
$region0: #{residual_block.7}
  #allocation0 [shape = 'u32[]', space=smem, size = 0x4, offset = 0x4, fixed_abs, tag = 'smem constant byte address 0x4 - core index']
  #allocation1 [shape = 'u32[144,128]{1,0:T(1,128)}', space=vmem, size = 0x12000, scoped, tag = 'internal scratch']
  %s0 = inlined_call_operand.vmem [shape: bf16[128,128], index: 0, kind: input, shape index: {}]
  %s1 = inlined_call_operand.vmem [shape: f32[1,1,128], index: 1, kind: input, shape index: {}]
  %s2 = inlined_call_operand.vmem [shape: f32[1,1,128], index: 2, kind: input, shape index: {}]
  %s3 = inlined_call_operand.vmem [shape: f32[1,128], index: 3, kind: input, shape index: {}]
  %s4 = inlined_call_operand.vmem [shape: f32[1,128], index: 4, kind: input, shape index: {}]
  %s5 = inlined_call_operand.vmem [shape: f32[128,128], index: 5, kind: output, shape index: {}]
  %s6 = sld [smem:[#allocation0]]
  $region30: #{residual_block.7} parent=0
    _
  %s8 = ssub.s32 1, %s6
  %s9 = scalar_select 0, %s8, %s6
  // Predicated region
  $region2: #{residual_block.7} parent=0 // pred_check
    _
  $region3: #{residual_block.7} parent=0 // pred_check_branch
    %11 = sbr.rel (0) target = $region5
  $region4: #{residual_block.7} parent=0 // pred_region
    _
  $region5: #{residual_block.7} parent=0 // pred_fallthru
    _
  // Predicated region
  $region6: #{residual_block.7} parent=0 // pred_check
    _
  $region7: #{residual_block.7} parent=0 // pred_check_branch
    %13 = sbr.rel (0) target = $region9
  $region8: #{residual_block.7} parent=0 // pred_region
    _
  $region9: #{residual_block.7} parent=0 // pred_fallthru
    _
  // Predicated region
  $region10: #{residual_block.7} parent=0 // pred_check
    _
  $region11: #{residual_block.7} parent=0 // pred_check_branch
    %15 = sbr.rel (0) target = $region13
  $region12: #{residual_block.7} parent=0 // pred_region
    _
  $region13: #{residual_block.7} parent=0 // pred_fallthru
    _
  // Predicated region
  $region14: #{residual_block.7} parent=0 // pred_check
    _
  $region15: #{residual_block.7} parent=0 // pred_check_branch
    %17 = sbr.rel (0) target = $region17
  $region16: #{residual_block.7} parent=0 // pred_region
    _
  $region17: #{residual_block.7} parent=0 // pred_fallthru
    _
  // Predicated region
  $region18: #{residual_block.7} parent=0 // pred_check
    _
  $region19: #{residual_block.7} parent=0 // pred_check_branch
    %19 = sbr.rel (0) target = $region21
  $region20: #{residual_block.7} parent=0 // pred_region
    _
  $region21: #{residual_block.7} parent=0 // pred_fallthru
    _
  %v20 = vld [vmem:[%s1] sm:$0x1]
  %v21 = vadd.f32 %v20, 0.0
  %v22 = vld [vmem:[%s2] sm:$0x1]
  %v23 = vadd.f32 %v22, 0.0
  %v24 = vmul.f32 %v21, 0.0078125
  %v25 = vmul.f32 %v23, 0.0078125
  %v26 = vmul.f32 %v24, %v24
  %v27 = vsub.f32 %v25, %v26
  %v28 = vmax.f32 %v27, 0.0
  %v29 = vld [vmem:[%s3] sm:$0x1]
  %v30 = vadd.f32 %v28, 1e-05
  %v31 = vrsqrt.pop %v30
  %v32 = vmul.f32 %v29, %v31
  %v33 = vld [vmem:[%s4] sm:$0x1]
  %v34 = vmul.f32 %v24, %v32
  %v35 = vsub.f32 %v33, %v34
  %v36 = vld [vmem:[%s0] sm:$0xf]
  %v37 = vld [vmem:[%s0 + $0x4] sm:$0xf]
  %v38 = vld [vmem:[%s0 + $0x8] sm:$0xf]
  %v39 = vld [vmem:[%s0 + $0xc] sm:$0xf]
  %v40 = vld [vmem:[%s0 + $0x10] sm:$0xf]
  %v41 = vld [vmem:[%s0 + $0x14] sm:$0xf]
  %v42 = vld [vmem:[%s0 + $0x18] sm:$0xf]
  %v43 = vld [vmem:[%s0 + $0x1c] sm:$0xf]
  %v44 = vld [vmem:[%s0 + $0x20] sm:$0xf]
  %v45 = vld [vmem:[%s0 + $0x24] sm:$0xf]
  %v46 = vld [vmem:[%s0 + $0x28] sm:$0xf]
  %v47 = vld [vmem:[%s0 + $0x2c] sm:$0xf]
  %v48 = vld [vmem:[%s0 + $0x30] sm:$0xf]
  %v49 = vld [vmem:[%s0 + $0x34] sm:$0xf]
  %v50 = vld [vmem:[%s0 + $0x38] sm:$0xf]
  %v51 = vld [vmem:[%s0 + $0x3c] sm:$0xf]
  %v52 = vunpack.c.l.bf16 %v36
  %v53 = vunpack.c.l.bf16 %v37
  %v54 = vunpack.c.l.bf16 %v38
  %v55 = vunpack.c.l.bf16 %v39
  %v56 = vunpack.c.l.bf16 %v40
  %v57 = vunpack.c.l.bf16 %v41
  %v58 = vunpack.c.l.bf16 %v42
  %v59 = vunpack.c.l.bf16 %v43
  %v60 = vunpack.c.l.bf16 %v44
  %v61 = vunpack.c.l.bf16 %v45
  %v62 = vunpack.c.l.bf16 %v46
  %v63 = vunpack.c.l.bf16 %v47
  %v64 = vunpack.c.l.bf16 %v48
  %v65 = vunpack.c.l.bf16 %v49
  %v66 = vunpack.c.l.bf16 %v50
  %v67 = vunpack.c.l.bf16 %v51
  %v69 = vlaneseq
  %v70 = vshrl.u32 %v69, 7
  %v71 = vsub.s32 0, %v70
  %v72 = vrot.slane %v32, %v71
  %v74 = vmul.f32 %v52, %v72
  %v75 = vmul.f32 %v53, %v72
  %v76 = vmul.f32 %v54, %v72
  %v77 = vmul.f32 %v55, %v72
  %v78 = vmul.f32 %v56, %v72
  %v79 = vmul.f32 %v57, %v72
  %v80 = vmul.f32 %v58, %v72
  %v81 = vmul.f32 %v59, %v72
  %v82 = vmul.f32 %v60, %v72
  %v83 = vmul.f32 %v61, %v72
  %v84 = vmul.f32 %v62, %v72
  %v85 = vmul.f32 %v63, %v72
  %v86 = vmul.f32 %v64, %v72
  %v87 = vmul.f32 %v65, %v72
  %v88 = vmul.f32 %v66, %v72
  %v89 = vmul.f32 %v67, %v72
  %v91 = vlaneseq
  %v92 = vshrl.u32 %v91, 7
  %v93 = vsub.s32 0, %v92
  %v94 = vrot.slane %v35, %v93
  %v96 = vadd.f32 %v74, %v94
  %v97 = vadd.f32 %v75, %v94
  %v98 = vadd.f32 %v76, %v94
  %v99 = vadd.f32 %v77, %v94
  %v100 = vadd.f32 %v78, %v94
  %v101 = vadd.f32 %v79, %v94
  %v102 = vadd.f32 %v80, %v94
  %v103 = vadd.f32 %v81, %v94
  %v104 = vadd.f32 %v82, %v94
  %v105 = vadd.f32 %v83, %v94
  %v106 = vadd.f32 %v84, %v94
  %v107 = vadd.f32 %v85, %v94
  %v108 = vadd.f32 %v86, %v94
  %v109 = vadd.f32 %v87, %v94
  %v110 = vadd.f32 %v88, %v94
  %v111 = vadd.f32 %v89, %v94
  %112 = vst [vmem:[%s5] sm:$0xff] %v96
  %113 = vst [vmem:[%s5 + $0x8] sm:$0xff] %v97
  %114 = vst [vmem:[%s5 + $0x10] sm:$0xff] %v98
  %115 = vst [vmem:[%s5 + $0x18] sm:$0xff] %v99
  %116 = vst [vmem:[%s5 + $0x20] sm:$0xff] %v100
  %117 = vst [vmem:[%s5 + $0x28] sm:$0xff] %v101
  %118 = vst [vmem:[%s5 + $0x30] sm:$0xff] %v102
  %119 = vst [vmem:[%s5 + $0x38] sm:$0xff] %v103
  %120 = vst [vmem:[%s5 + $0x40] sm:$0xff] %v104
  %121 = vst [vmem:[%s5 + $0x48] sm:$0xff] %v105
  %122 = vst [vmem:[%s5 + $0x50] sm:$0xff] %v106
  %123 = vst [vmem:[%s5 + $0x58] sm:$0xff] %v107
  %124 = vst [vmem:[%s5 + $0x60] sm:$0xff] %v108
  %125 = vst [vmem:[%s5 + $0x68] sm:$0xff] %v109
  %126 = vst [vmem:[%s5 + $0x70] sm:$0xff] %v110
  %127 = vst [vmem:[%s5 + $0x78] sm:$0xff] %v111
  // Predicated region
  $region22: #{residual_block.7} parent=0 // pred_check
    _
  $region23: #{residual_block.7} parent=0 // pred_check_branch
    %129 = sbr.rel (0) target = $region25
  $region24: #{residual_block.7} parent=0 // pred_region
    _
  $region25: #{residual_block.7} parent=0 // pred_fallthru
    _
  // Predicated region
  $region26: #{residual_block.7} parent=0 // pred_check
    _
  $region27: #{residual_block.7} parent=0 // pred_check_branch
    %131 = sbr.rel (0) target = $region29
  $region28: #{residual_block.7} parent=0 // pred_region
    _
  $region29: #{residual_block.7} parent=0 // pred_fallthru
    _

// kernel: residual_block.11
$region0: #{residual_block.11}
  #allocation0 [shape = 'u32[]', space=smem, size = 0x4, offset = 0x4, fixed_abs, tag = 'smem constant byte address 0x4 - core index']
  #allocation1 [shape = 'u32[144,128]{1,0:T(1,128)}', space=vmem, size = 0x12000, scoped, tag = 'internal scratch']
  %s0 = inlined_call_operand.vmem [shape: bf16[128,128], index: 0, kind: input, shape index: {}]
  %s1 = inlined_call_operand.vmem [shape: f32[1,1,128], index: 1, kind: input, shape index: {}]
  %s2 = inlined_call_operand.vmem [shape: f32[1,1,128], index: 2, kind: input, shape index: {}]
  %s3 = inlined_call_operand.vmem [shape: f32[1,128], index: 3, kind: input, shape index: {}]
  %s4 = inlined_call_operand.vmem [shape: f32[1,128], index: 4, kind: input, shape index: {}]
  %s5 = inlined_call_operand.vmem [shape: f32[128,128], index: 5, kind: input, shape index: {}]
  %s6 = inlined_call_operand.vmem [shape: f32[128,128], index: 6, kind: output, shape index: {}]
  %s7 = sld [smem:[#allocation0]]
  $region34: #{residual_block.11} parent=0
    _
  %s9 = ssub.s32 1, %s7
  %s10 = scalar_select 0, %s9, %s7
  // Predicated region
  $region2: #{residual_block.11} parent=0 // pred_check
    _
  $region3: #{residual_block.11} parent=0 // pred_check_branch
    %12 = sbr.rel (0) target = $region5
  $region4: #{residual_block.11} parent=0 // pred_region
    _
  $region5: #{residual_block.11} parent=0 // pred_fallthru
    _
  // Predicated region
  $region6: #{residual_block.11} parent=0 // pred_check
    _
  $region7: #{residual_block.11} parent=0 // pred_check_branch
    %14 = sbr.rel (0) target = $region9
  $region8: #{residual_block.11} parent=0 // pred_region
    _
  $region9: #{residual_block.11} parent=0 // pred_fallthru
    _
  // Predicated region
  $region10: #{residual_block.11} parent=0 // pred_check
    _
  $region11: #{residual_block.11} parent=0 // pred_check_branch
    %16 = sbr.rel (0) target = $region13
  $region12: #{residual_block.11} parent=0 // pred_region
    _
  $region13: #{residual_block.11} parent=0 // pred_fallthru
    _
  // Predicated region
  $region14: #{residual_block.11} parent=0 // pred_check
    _
  $region15: #{residual_block.11} parent=0 // pred_check_branch
    %18 = sbr.rel (0) target = $region17
  $region16: #{residual_block.11} parent=0 // pred_region
    _
  $region17: #{residual_block.11} parent=0 // pred_fallthru
    _
  // Predicated region
  $region18: #{residual_block.11} parent=0 // pred_check
    _
  $region19: #{residual_block.11} parent=0 // pred_check_branch
    %20 = sbr.rel (0) target = $region21
  $region20: #{residual_block.11} parent=0 // pred_region
    _
  $region21: #{residual_block.11} parent=0 // pred_fallthru
    _
  // Predicated region
  $region22: #{residual_block.11} parent=0 // pred_check
    _
  $region23: #{residual_block.11} parent=0 // pred_check_branch
    %22 = sbr.rel (0) target = $region25
  $region24: #{residual_block.11} parent=0 // pred_region
    _
  $region25: #{residual_block.11} parent=0 // pred_fallthru
    _
  %v23 = vld [vmem:[%s1] sm:$0x1]
  %v24 = vadd.f32 %v23, 0.0
  %v25 = vld [vmem:[%s2] sm:$0x1]
  %v26 = vadd.f32 %v25, 0.0
  %v27 = vmul.f32 %v24, 0.0078125
  %v28 = vmul.f32 %v26, 0.0078125
  %v29 = vmul.f32 %v27, %v27
  %v30 = vsub.f32 %v28, %v29
  %v31 = vmax.f32 %v30, 0.0
  %v32 = vld [vmem:[%s3] sm:$0x1]
  %v33 = vadd.f32 %v31, 1e-05
  %v34 = vrsqrt.pop %v33
  %v35 = vmul.f32 %v32, %v34
  %v36 = vld [vmem:[%s4] sm:$0x1]
  %v37 = vmul.f32 %v27, %v35
  %v38 = vsub.f32 %v36, %v37
  %v39 = vld [vmem:[%s0] sm:$0xf]
  %v40 = vld [vmem:[%s0 + $0x4] sm:$0xf]
  %v41 = vld [vmem:[%s0 + $0x8] sm:$0xf]
  %v42 = vld [vmem:[%s0 + $0xc] sm:$0xf]
  %v43 = vld [vmem:[%s0 + $0x10] sm:$0xf]
  %v44 = vld [vmem:[%s0 + $0x14] sm:$0xf]
  %v45 = vld [vmem:[%s0 + $0x18] sm:$0xf]
  %v46 = vld [vmem:[%s0 + $0x1c] sm:$0xf]
  %v47 = vld [vmem:[%s0 + $0x20] sm:$0xf]
  %v48 = vld [vmem:[%s0 + $0x24] sm:$0xf]
  %v49 = vld [vmem:[%s0 + $0x28] sm:$0xf]
  %v50 = vld [vmem:[%s0 + $0x2c] sm:$0xf]
  %v51 = vld [vmem:[%s0 + $0x30] sm:$0xf]
  %v52 = vld [vmem:[%s0 + $0x34] sm:$0xf]
  %v53 = vld [vmem:[%s0 + $0x38] sm:$0xf]
  %v54 = vld [vmem:[%s0 + $0x3c] sm:$0xf]
  %v55 = vunpack.c.l.bf16 %v39
  %v56 = vunpack.c.l.bf16 %v40
  %v57 = vunpack.c.l.bf16 %v41
  %v58 = vunpack.c.l.bf16 %v42
  %v59 = vunpack.c.l.bf16 %v43
  %v60 = vunpack.c.l.bf16 %v44
  %v61 = vunpack.c.l.bf16 %v45
  %v62 = vunpack.c.l.bf16 %v46
  %v63 = vunpack.c.l.bf16 %v47
  %v64 = vunpack.c.l.bf16 %v48
  %v65 = vunpack.c.l.bf16 %v49
  %v66 = vunpack.c.l.bf16 %v50
  %v67 = vunpack.c.l.bf16 %v51
  %v68 = vunpack.c.l.bf16 %v52
  %v69 = vunpack.c.l.bf16 %v53
  %v70 = vunpack.c.l.bf16 %v54
  %v72 = vlaneseq
  %v73 = vshrl.u32 %v72, 7
  %v74 = vsub.s32 0, %v73
  %v75 = vrot.slane %v35, %v74
  %v77 = vmul.f32 %v55, %v75
  %v78 = vmul.f32 %v56, %v75
  %v79 = vmul.f32 %v57, %v75
  %v80 = vmul.f32 %v58, %v75
  %v81 = vmul.f32 %v59, %v75
  %v82 = vmul.f32 %v60, %v75
  %v83 = vmul.f32 %v61, %v75
  %v84 = vmul.f32 %v62, %v75
  %v85 = vmul.f32 %v63, %v75
  %v86 = vmul.f32 %v64, %v75
  %v87 = vmul.f32 %v65, %v75
  %v88 = vmul.f32 %v66, %v75
  %v89 = vmul.f32 %v67, %v75
  %v90 = vmul.f32 %v68, %v75
  %v91 = vmul.f32 %v69, %v75
  %v92 = vmul.f32 %v70, %v75
  %v94 = vlaneseq
  %v95 = vshrl.u32 %v94, 7
  %v96 = vsub.s32 0, %v95
  %v97 = vrot.slane %v38, %v96
  %v99 = vadd.f32 %v77, %v97
  %v100 = vadd.f32 %v78, %v97
  %v101 = vadd.f32 %v79, %v97
  %v102 = vadd.f32 %v80, %v97
  %v103 = vadd.f32 %v81, %v97
  %v104 = vadd.f32 %v82, %v97
  %v105 = vadd.f32 %v83, %v97
  %v106 = vadd.f32 %v84, %v97
  %v107 = vadd.f32 %v85, %v97
  %v108 = vadd.f32 %v86, %v97
  %v109 = vadd.f32 %v87, %v97
  %v110 = vadd.f32 %v88, %v97
  %v111 = vadd.f32 %v89, %v97
  %v112 = vadd.f32 %v90, %v97
  %v113 = vadd.f32 %v91, %v97
  %v114 = vadd.f32 %v92, %v97
  %v115 = vld [vmem:[%s5] sm:$0xff]
  %v116 = vld [vmem:[%s5 + $0x8] sm:$0xff]
  %v117 = vld [vmem:[%s5 + $0x10] sm:$0xff]
  %v118 = vld [vmem:[%s5 + $0x18] sm:$0xff]
  %v119 = vld [vmem:[%s5 + $0x20] sm:$0xff]
  %v120 = vld [vmem:[%s5 + $0x28] sm:$0xff]
  %v121 = vld [vmem:[%s5 + $0x30] sm:$0xff]
  %v122 = vld [vmem:[%s5 + $0x38] sm:$0xff]
  %v123 = vld [vmem:[%s5 + $0x40] sm:$0xff]
  %v124 = vld [vmem:[%s5 + $0x48] sm:$0xff]
  %v125 = vld [vmem:[%s5 + $0x50] sm:$0xff]
  %v126 = vld [vmem:[%s5 + $0x58] sm:$0xff]
  %v127 = vld [vmem:[%s5 + $0x60] sm:$0xff]
  %v128 = vld [vmem:[%s5 + $0x68] sm:$0xff]
  %v129 = vld [vmem:[%s5 + $0x70] sm:$0xff]
  %v130 = vld [vmem:[%s5 + $0x78] sm:$0xff]
  %v131 = vadd.f32 %v99, %v115
  %v132 = vadd.f32 %v100, %v116
  %v133 = vadd.f32 %v101, %v117
  %v134 = vadd.f32 %v102, %v118
  %v135 = vadd.f32 %v103, %v119
  %v136 = vadd.f32 %v104, %v120
  %v137 = vadd.f32 %v105, %v121
  %v138 = vadd.f32 %v106, %v122
  %v139 = vadd.f32 %v107, %v123
  %v140 = vadd.f32 %v108, %v124
  %v141 = vadd.f32 %v109, %v125
  %v142 = vadd.f32 %v110, %v126
  %v143 = vadd.f32 %v111, %v127
  %v144 = vadd.f32 %v112, %v128
  %v145 = vadd.f32 %v113, %v129
  %v146 = vadd.f32 %v114, %v130
  %v147 = vmax.f32 %v131, 0.0
  %v148 = vmax.f32 %v132, 0.0
  %v149 = vmax.f32 %v133, 0.0
  %v150 = vmax.f32 %v134, 0.0
  %v151 = vmax.f32 %v135, 0.0
  %v152 = vmax.f32 %v136, 0.0
  %v153 = vmax.f32 %v137, 0.0
  %v154 = vmax.f32 %v138, 0.0
  %v155 = vmax.f32 %v139, 0.0
  %v156 = vmax.f32 %v140, 0.0
  %v157 = vmax.f32 %v141, 0.0
  %v158 = vmax.f32 %v142, 0.0
  %v159 = vmax.f32 %v143, 0.0
  %v160 = vmax.f32 %v144, 0.0
  %v161 = vmax.f32 %v145, 0.0
  %v162 = vmax.f32 %v146, 0.0
  %163 = vst [vmem:[%s6] sm:$0xff] %v147
  %164 = vst [vmem:[%s6 + $0x8] sm:$0xff] %v148
  %165 = vst [vmem:[%s6 + $0x10] sm:$0xff] %v149
  %166 = vst [vmem:[%s6 + $0x18] sm:$0xff] %v150
  %167 = vst [vmem:[%s6 + $0x20] sm:$0xff] %v151
  %168 = vst [vmem:[%s6 + $0x28] sm:$0xff] %v152
  %169 = vst [vmem:[%s6 + $0x30] sm:$0xff] %v153
  %170 = vst [vmem:[%s6 + $0x38] sm:$0xff] %v154
  %171 = vst [vmem:[%s6 + $0x40] sm:$0xff] %v155
  %172 = vst [vmem:[%s6 + $0x48] sm:$0xff] %v156
  %173 = vst [vmem:[%s6 + $0x50] sm:$0xff] %v157
  %174 = vst [vmem:[%s6 + $0x58] sm:$0xff] %v158
  %175 = vst [vmem:[%s6 + $0x60] sm:$0xff] %v159
  %176 = vst [vmem:[%s6 + $0x68] sm:$0xff] %v160
  %177 = vst [vmem:[%s6 + $0x70] sm:$0xff] %v161
  %178 = vst [vmem:[%s6 + $0x78] sm:$0xff] %v162
  // Predicated region
  $region26: #{residual_block.11} parent=0 // pred_check
    _
  $region27: #{residual_block.11} parent=0 // pred_check_branch
    %180 = sbr.rel (0) target = $region29
  $region28: #{residual_block.11} parent=0 // pred_region
    _
  $region29: #{residual_block.11} parent=0 // pred_fallthru
    _
  // Predicated region
  $region30: #{residual_block.11} parent=0 // pred_check
    _
  $region31: #{residual_block.11} parent=0 // pred_check_branch
    %182 = sbr.rel (0) target = $region33
  $region32: #{residual_block.11} parent=0 // pred_region
    _
  $region33: #{residual_block.11} parent=0 // pred_fallthru
    _

</llo_original>
